<compile_context>
chip_gen: v7x
topology: tpu7x:2x2x1
jax: 0.10.0
libtpu: 0.0.40
codegen_flags: <defaults>
</compile_context>

<pallas_src>
import jax
import jax.numpy as jnp
from jax import lax
from jax.experimental import pallas as pl
from jax.experimental.pallas import tpu as pltpu


# ----------------------------------------------------------------------------- kernels

def _matmul_bias_kernel(x_ref, w_ref, b_ref, o_ref):
    """o = x @ w + b  (single big lane-dense matmul, f32 accumulation)."""
    o_ref[...] = (jnp.dot(x_ref[...], w_ref[...], preferred_element_type=jnp.float32)
                  + b_ref[...]).astype(o_ref.dtype)


def _head_softmax_kernel(h_ref, w_ref, b_ref, y_ref):
    """y = softmax(h @ W_hy + b_y, axis=-1) over all rows at once."""
    logits = (jnp.dot(h_ref[...], w_ref[...], preferred_element_type=jnp.float32)
              + b_ref[...])
    m = jnp.max(logits, axis=-1, keepdims=True)
    e = jnp.exp(logits - m)
    denom = jnp.sum(e, axis=-1, keepdims=True)
    y_ref[...] = (e * pl.reciprocal(denom, approx=True)).astype(y_ref.dtype)


def _lstm_recurrent_kernel(up_ref, wh_ref, h0_ref, h_out_ref, h_scr):
    """One grid step == one chunk of Tc timesteps.  h_scr persists across chunks.

    up_ref    : (Tc, B_pad, 4*N_h)  precomputed input projection (+ gate biases), f32
    wh_ref    : (N_h, 4*N_h)        fused recurrent weights [W_hf|W_hi|W_ho|W_hc]
    h0_ref    : (1, N_h)            initial hidden state
    h_out_ref : (Tc, B_pad, N_h)    per-step hidden states (consumed by the output head)
    h_scr     : (B_pad, N_h)        recurrent state carried across chunks
    """
    @pl.when(pl.program_id(0) == 0)
    def _():
        h_scr[...] = jnp.broadcast_to(h0_ref[...], h_scr.shape)

    w_h = wh_ref[...]
    n_h = h_scr.shape[-1]
    tc = up_ref.shape[0]

    def step(s, h):
        # Single fused gate matmul: (B, N_h) @ (N_h, 4*N_h) -> (B, 4*N_h)
        gates = up_ref[s] + jnp.dot(h.astype(w_h.dtype), w_h,
                                    preferred_element_type=jnp.float32)
        f_g = jax.nn.sigmoid(gates[:, 0 * n_h:1 * n_h])
        i_g = jax.nn.sigmoid(gates[:, 1 * n_h:2 * n_h])
        o_g = jax.nn.sigmoid(gates[:, 2 * n_h:3 * n_h])
        c_t = jnp.tanh(gates[:, 3 * n_h:4 * n_h])
        # NOTE: reference really computes c = f*h + i*c_tilde (previous h, NOT previous c);
        # previous c is never read, so no cell-state scratch is kept.
        c_new = f_g * h + i_g * c_t
        h_new = o_g * jnp.tanh(c_new)
        h_out_ref[s] = h_new
        return h_new

    h_final = lax.fori_loop(0, tc, step, h_scr[...], unroll=(tc <= 16))
    h_scr[...] = h_final


# ----------------------------------------------------------------------------- wrapper

def _pick_time_chunk(T, max_chunk=16):
    tc = min(T, max_chunk)
    while T % tc != 0:
        tc -= 1
    return tc


def _full_spec(shape):
    nd = len(shape)
    return pl.BlockSpec(shape, lambda i, _nd=nd: (0,) * _nd)


def lstm_forward(u, params, compute_dtype=jnp.float32, max_time_chunk=16):
    """u: (batch, T, N_in) float32 -> y: (batch, T, N_out) float32."""
    B, T, N_in = u.shape
    N_h = params["W_hf"].shape[0]
    N_out = params["W_hy"].shape[1]

    B_pad = ((max(B, 8) + 7) // 8) * 8          # pad batch to the f32 sublane tile
    Tc = _pick_time_chunk(T, max_time_chunk)

    # ---- fused parameters (concat along the gate axis -> one 4*N_h-wide matmul) ----
    w_u_all = jnp.concatenate(
        [params["W_uf"], params["W_ui"], params["W_uo"], params["W_uc"]], axis=1
    ).astype(compute_dtype)                                    # (N_in, 4*N_h)
    w_h_all = jnp.concatenate(
        [params["W_hf"], params["W_hi"], params["W_ho"], params["W_hc"]], axis=1
    ).astype(compute_dtype)                                    # (N_h, 4*N_h)
    b_gates = jnp.concatenate(
        [params["b_f"], params["b_i"], params["b_o"], params["b_c"]], axis=1
    ).astype(jnp.float32)                                      # (1, 4*N_h)
    w_hy = params["W_hy"].astype(compute_dtype)
    b_y = params["b_y"].astype(jnp.float32)
    h0 = params["h0"].astype(jnp.float32)

    # ---- time-major, batch-padded input ----
    u_tm = jnp.transpose(u, (1, 0, 2))                         # (T, B, N_in)
    if B_pad != B:
        u_tm = jnp.pad(u_tm, ((0, 0), (0, B_pad - B), (0, 0)))
    u_flat = u_tm.reshape(T * B_pad, N_in).astype(compute_dtype)

    # ---- (1) input projection: one big matmul off the serial path ----
    u_proj = pl.pallas_call(
        _matmul_bias_kernel,
        out_shape=jax.ShapeDtypeStruct((T * B_pad, 4 * N_h), jnp.float32),
        grid_spec=pltpu.PrefetchScalarGridSpec(
            num_scalar_prefetch=0, grid=(1,),
            in_specs=[_full_spec((T * B_pad, N_in)),
                      _full_spec((N_in, 4 * N_h)),
                      _full_spec((1, 4 * N_h))],
            out_specs=_full_spec((T * B_pad, 4 * N_h))),
    )(u_flat, w_u_all, b_gates)
    u_proj = u_proj.reshape(T, B_pad, 4 * N_h)

    # ---- (2) sequential recurrence, time-chunked ----
    # TODO(synk): for v7x (2 TensorCores) a 'parallel' batch grid axis would let both cores
    # run independent batch shards; with the tiny demo batch it is left as a single shard.
    h_seq = pl.pallas_call(
        _lstm_recurrent_kernel,
        out_shape=jax.ShapeDtypeStruct((T, B_pad, N_h), jnp.float32),
        grid_spec=pltpu.PrefetchScalarGridSpec(
            num_scalar_prefetch=0,
            grid=(T // Tc,),
            in_specs=[
                pl.BlockSpec((Tc, B_pad, 4 * N_h), lambda c: (c, 0, 0)),   # U_proj chunk
                pl.BlockSpec((N_h, 4 * N_h), lambda c: (0, 0)),            # fused W_h (resident)
                pl.BlockSpec((1, N_h), lambda c: (0, 0)),                  # h0
            ],
            out_specs=pl.BlockSpec((Tc, B_pad, N_h), lambda c: (c, 0, 0)),
            scratch_shapes=[pltpu.VMEM((B_pad, N_h), jnp.float32)],        # h state only
        ),
        compiler_params=pltpu.CompilerParams(
            dimension_semantics=("arbitrary",),      # recurrence: strictly sequential in time
        ),
    )(u_proj, w_h_all, h0)

    # ---- (3) output head + softmax: one big matmul off the serial path ----
    y_flat = pl.pallas_call(
        _head_softmax_kernel,
        out_shape=jax.ShapeDtypeStruct((T * B_pad, N_out), jnp.float32),
        grid_spec=pltpu.PrefetchScalarGridSpec(
            num_scalar_prefetch=0, grid=(1,),
            in_specs=[_full_spec((T * B_pad, N_h)),
                      _full_spec((N_h, N_out)),
                      _full_spec((1, N_out))],
            out_specs=_full_spec((T * B_pad, N_out))),
    )(h_seq.reshape(T * B_pad, N_h).astype(compute_dtype), w_hy, b_y)

    y_tm = y_flat.reshape(T, B_pad, N_out)[:, :B, :]
    return jnp.transpose(y_tm, (1, 0, 2))                      # back to (B, T, N_out)


# ----------------------------------------------------------------------------- reference & params

def lstm_reference(u, params):
    """Pure-JAX reference mirroring the PyTorch forward."""
    B, T, _ = u.shape
    h = jnp.broadcast_to(params["h0"], (B, params["h0"].shape[-1]))
    ys = []
    for t in range(T):
        u_t = u[:, t, :]
        f = jax.nn.sigmoid(h @ params["W_hf"] + u_t @ params["W_uf"] + params["b_f"])
        i = jax.nn.sigmoid(h @ params["W_hi"] + u_t @ params["W_ui"] + params["b_i"])
        o = jax.nn.sigmoid(h @ params["W_ho"] + u_t @ params["W_uo"] + params["b_o"])
        c_tilde = jnp.tanh(h @ params["W_hc"] + u_t @ params["W_uc"] + params["b_c"])
        c = f * h + i * c_tilde
        h = o * jnp.tanh(c)
        y = jax.nn.softmax(h @ params["W_hy"] + params["b_y"], axis=-1)
        ys.append(y)
    return jnp.stack(ys, axis=1)


def make_params(key, N_in, N_h, N_out):
    """Deterministic synthetic init (stand-in for sparse_normal_weights)."""
    ks = jax.random.split(key, 12)
    n = lambda k, shape, fan: (jax.random.normal(k, shape, jnp.float32)
                               / jnp.sqrt(jnp.float32(fan)))
    return {
        "W_uf": n(ks[0], (N_in, N_h), N_in),
        "W_ui": n(ks[1], (N_in, N_h), N_in),
        "W_uo": n(ks[2], (N_in, N_h), N_in),
        "W_uc": n(ks[3], (N_in, N_h), N_in),
        # W_uh exists in __init__ but is unused in forward; omitted.
        "W_hf": n(ks[4], (N_h, N_h), N_h),
        "W_hi": n(ks[5], (N_h, N_h), N_h),
        "W_ho": n(ks[6], (N_h, N_h), N_h),
        "W_hc": n(ks[7], (N_h, N_h), N_h),
        "W_hy": n(ks[8], (N_h, N_out), N_h),
        "b_f": jnp.zeros((1, N_h), jnp.float32),
        "b_i": jnp.zeros((1, N_h), jnp.float32),
        "b_o": jnp.zeros((1, N_h), jnp.float32),
        "b_c": jnp.zeros((1, N_h), jnp.float32),
        "b_y": jnp.zeros((1, N_out), jnp.float32),
        "h0": jax.random.normal(ks[9], (1, N_h), jnp.float32),
        "c0": jax.random.normal(ks[10], (1, N_h), jnp.float32),  # kept for parity; dead in forward
    }


if __name__ == "__main__":
    key = jax.random.PRNGKey(0)
    k_u, k_p, k_u2 = jax.random.split(key, 3)

    # Small shapes consistent with the module's forward: u is (batch, T, N_in).
    B, T, N_in, N_h, N_out = 2, 8, 4, 32, 4
    u = jax.random.normal(k_u, (B, T, N_in), jnp.float32)
    params = make_params(k_p, N_in, N_h, N_out)

    fwd = jax.jit(lstm_forward)

    # Single-chunk case (T=8 -> grid of 1 time chunk).
    y = jax.block_until_ready(fwd(u, params))
    y_ref = lstm_reference(u, params)
    assert y.shape == (B, T, N_out)
    assert jnp.allclose(y, y_ref, atol=1e-2, rtol=1e-2), "mismatch vs. reference (T=8)"

    # Multi-chunk case exercises scratch state persistence across grid steps (T=32 -> 2 chunks).
    T2 = 32
    u2 = jax.random.normal(k_u2, (B, T2, N_in), jnp.float32)
    y2 = jax.block_until_ready(fwd(u2, params))
    y2_ref = lstm_reference(u2, params)
    assert y2.shape == (B, T2, N_out)
    assert jnp.allclose(y2, y2_ref, atol=1e-2, rtol=1e-2), "mismatch vs. reference (T=32)"

    # TODO(synk): return_dynamics=True path (hd, cell outputs) not exposed; only y is returned.
    print("KERNEL_OK")
</pallas_src>

<mosaic_0001>
module attributes {stable_mosaic.version = 11 : i64} {
  func.func @_matmul_bias_kernel(%arg0: i32, %arg1: memref<64x4xf32, #tpu.memory_space<vmem>>, %arg2: memref<4x128xf32, #tpu.memory_space<vmem>>, %arg3: memref<1x128xf32, #tpu.memory_space<vmem>>, %arg4: memref<64x128xf32, #tpu.memory_space<vmem>>) attributes {dimension_semantics = [#tpu.dimension_semantics<arbitrary>], iteration_bounds = array<i64: 1>, scalar_prefetch = 0 : i64, scratch_operands = 0 : i64, tpu.core_type = #tpu.core_type<tc>, window_params = [{pipeline_mode = #tpu.pipeline_mode<synchronous>, transform_indices = @transform_0, window_bounds = array<i64: 64, 4>}, {pipeline_mode = #tpu.pipeline_mode<synchronous>, transform_indices = @transform_1, window_bounds = array<i64: 4, 128>}, {pipeline_mode = #tpu.pipeline_mode<synchronous>, transform_indices = @transform_2, window_bounds = array<i64: 1, 128>}, {pipeline_mode = #tpu.pipeline_mode<synchronous>, transform_indices = @transform_3, window_bounds = array<i64: 64, 128>}]} {
    %c0 = arith.constant 0 : index
    %c0_0 = arith.constant 0 : index
    %0 = vector.load %arg1[%c0, %c0_0] : memref<64x4xf32, #tpu.memory_space<vmem>>, vector<64x4xf32>
    %c0_1 = arith.constant 0 : index
    %c0_2 = arith.constant 0 : index
    %1 = vector.load %arg2[%c0_1, %c0_2] : memref<4x128xf32, #tpu.memory_space<vmem>>, vector<4x128xf32>
    %cst = arith.constant dense<0.000000e+00> : vector<64x128xf32>
    %2 = tpu.matmul %0, %1, %cst {dimension_numbers = #tpu.dot_dimension_numbers<[1], [0], [0], [1], [0, 0, 1, 1], [], []>} : vector<64x4xf32>, vector<4x128xf32>, vector<64x128xf32> -> vector<64x128xf32>
    %c0_3 = arith.constant 0 : index
    %c0_4 = arith.constant 0 : index
    %3 = vector.load %arg3[%c0_3, %c0_4] : memref<1x128xf32, #tpu.memory_space<vmem>>, vector<1x128xf32>
    %4 = vector.broadcast %3 : vector<1x128xf32> to vector<64x128xf32>
    %5 = arith.addf %2, %4 : vector<64x128xf32>
    %c0_5 = arith.constant 0 : index
    %c0_6 = arith.constant 0 : index
    %6 = vector.load %arg4[%c0_5, %c0_6] : memref<64x128xf32, #tpu.memory_space<vmem>>, vector<64x128xf32>
    tpu.vector_store %arg4[%c0_5, %c0_6], %5 {strides = array<i32>} : memref<64x128xf32, #tpu.memory_space<vmem>>, vector<64x128xf32>,
    return
  }
  func.func @transform_0(%arg0: i32) -> (i32, i32) {
    %c0_i32 = arith.constant 0 : i32
    %c0_i32_0 = arith.constant 0 : i32
    %c0_i32_1 = arith.constant 0 : i32
    return %c0_i32, %c0_i32_0 : i32, i32
  }
  func.func @transform_1(%arg0: i32) -> (i32, i32) {
    %c0_i32 = arith.constant 0 : i32
    %c0_i32_0 = arith.constant 0 : i32
    %c0_i32_1 = arith.constant 0 : i32
    return %c0_i32, %c0_i32_0 : i32, i32
  }
  func.func @transform_2(%arg0: i32) -> (i32, i32) {
    %c0_i32 = arith.constant 0 : i32
    %c0_i32_0 = arith.constant 0 : i32
    %c0_i32_1 = arith.constant 0 : i32
    return %c0_i32, %c0_i32_0 : i32, i32
  }
  func.func @transform_3(%arg0: i32) -> (i32, i32) {
    %c0_i32 = arith.constant 0 : i32
    %c0_i32_0 = arith.constant 0 : i32
    %c0_i32_1 = arith.constant 0 : i32
    return %c0_i32, %c0_i32_0 : i32, i32
  }
}

module attributes {stable_mosaic.version = 11 : i64} {
  func.func @_lstm_recurrent_kernel(%arg0: i32, %arg1: memref<8x8x128xf32, #tpu.memory_space<vmem>>, %arg2: memref<32x128xf32, #tpu.memory_space<vmem>>, %arg3: memref<1x32xf32, #tpu.memory_space<vmem>>, %arg4: memref<8x8x32xf32, #tpu.memory_space<vmem>>, %arg5: memref<8x32xf32, #tpu.memory_space<vmem>>) attributes {dimension_semantics = [#tpu.dimension_semantics<arbitrary>], iteration_bounds = array<i64: 1>, scalar_prefetch = 0 : i64, scratch_operands = 1 : i64, tpu.core_type = #tpu.core_type<tc>, window_params = [{transform_indices = @transform_0, window_bounds = array<i64: 8, 8, 128>}, {pipeline_mode = #tpu.pipeline_mode<synchronous>, transform_indices = @transform_1, window_bounds = array<i64: 32, 128>}, {pipeline_mode = #tpu.pipeline_mode<synchronous>, transform_indices = @transform_2, window_bounds = array<i64: 1, 32>}, {transform_indices = @transform_3, window_bounds = array<i64: 8, 8, 32>}]} {
    %c0_i32 = arith.constant 0 : i32
    %0 = arith.cmpi eq, %arg0, %c0_i32 : i32
    %1 = arith.extui %0 : i1 to i32
    %c0_i32_0 = arith.constant 0 : i32
    %2 = arith.cmpi ne, %1, %c0_i32_0 : i32
    scf.if %2 {
      %c0_70 = arith.constant 0 : index
      %c0_71 = arith.constant 0 : index
      %278 = vector.load %arg3[%c0_70, %c0_71] : memref<1x32xf32, #tpu.memory_space<vmem>>, vector<1x32xf32>
      %279 = vector.shape_cast %278 : vector<1x32xf32> to vector<1x32xf32>
      %280 = vector.broadcast %279 : vector<1x32xf32> to vector<8x32xf32>
      %c0_72 = arith.constant 0 : index
      %c0_73 = arith.constant 0 : index
      %281 = vector.load %arg5[%c0_72, %c0_73] : memref<8x32xf32, #tpu.memory_space<vmem>>, vector<8x32xf32>
      tpu.vector_store %arg5[%c0_72, %c0_73], %280 {strides = array<i32>} : memref<8x32xf32, #tpu.memory_space<vmem>>, vector<8x32xf32>,
    } else {
    }
    %c0 = arith.constant 0 : index
    %c0_1 = arith.constant 0 : index
    %3 = vector.load %arg2[%c0, %c0_1] : memref<32x128xf32, #tpu.memory_space<vmem>>, vector<32x128xf32>
    %c0_2 = arith.constant 0 : index
    %c0_3 = arith.constant 0 : index
    %4 = vector.load %arg5[%c0_2, %c0_3] : memref<8x32xf32, #tpu.memory_space<vmem>>, vector<8x32xf32>
    %c0_i32_4 = arith.constant 0 : i32
    %5 = arith.index_cast %c0_i32_4 : i32 to index
    %c0_5 = arith.constant 0 : index
    %c0_6 = arith.constant 0 : index
    %6 = vector.load %arg1[%5, %c0_5, %c0_6] : memref<8x8x128xf32, #tpu.memory_space<vmem>>, vector<1x8x128xf32>
    %7 = vector.shape_cast %6 : vector<1x8x128xf32> to vector<8x128xf32>
    %cst = arith.constant dense<0.000000e+00> : vector<8x128xf32>
    %8 = tpu.matmul %4, %3, %cst {dimension_numbers = #tpu.dot_dimension_numbers<[1], [0], [0], [1], [0, 0, 1, 1], [], []>} : vector<8x32xf32>, vector<32x128xf32>, vector<8x128xf32> -> vector<8x128xf32>
    %9 = arith.addf %7, %8 : vector<8x128xf32>
    %10 = vector.extract_strided_slice %9 {offsets = [0, 0], sizes = [8, 32], strides = [1, 1]} : vector<8x128xf32> to vector<8x32xf32>
    %11 = arith.negf %10 : vector<8x32xf32>
    %12 = math.exp %11 : vector<8x32xf32>
    %cst_7 = arith.constant 1.000000e+00 : f32
    %13 = vector.broadcast %cst_7 : f32 to vector<8x32xf32>
    %14 = arith.addf %13, %12 : vector<8x32xf32>
    %15 = arith.divf %13, %14 : vector<8x32xf32>
    %16 = vector.extract_strided_slice %9 {offsets = [0, 32], sizes = [8, 32], strides = [1, 1]} : vector<8x128xf32> to vector<8x32xf32>
    %17 = arith.negf %16 : vector<8x32xf32>
    %18 = math.exp %17 : vector<8x32xf32>
    %cst_8 = arith.constant 1.000000e+00 : f32
    %19 = vector.broadcast %cst_8 : f32 to vector<8x32xf32>
    %20 = arith.addf %19, %18 : vector<8x32xf32>
    %21 = arith.divf %19, %20 : vector<8x32xf32>
    %22 = vector.extract_strided_slice %9 {offsets = [0, 64], sizes = [8, 32], strides = [1, 1]} : vector<8x128xf32> to vector<8x32xf32>
    %23 = arith.negf %22 : vector<8x32xf32>
    %24 = math.exp %23 : vector<8x32xf32>
    %cst_9 = arith.constant 1.000000e+00 : f32
    %25 = vector.broadcast %cst_9 : f32 to vector<8x32xf32>
    %26 = arith.addf %25, %24 : vector<8x32xf32>
    %27 = arith.divf %25, %26 : vector<8x32xf32>
    %28 = vector.extract_strided_slice %9 {offsets = [0, 96], sizes = [8, 32], strides = [1, 1]} : vector<8x128xf32> to vector<8x32xf32>
    %29 = math.tanh %28 : vector<8x32xf32>
    %30 = arith.mulf %15, %4 : vector<8x32xf32>
    %31 = arith.mulf %21, %29 : vector<8x32xf32>
    %32 = arith.addf %30, %31 : vector<8x32xf32>
    %33 = math.tanh %32 : vector<8x32xf32>
    %34 = arith.mulf %27, %33 : vector<8x32xf32>
    %35 = arith.index_cast %c0_i32_4 : i32 to index
    %c0_10 = arith.constant 0 : index
    %c0_11 = arith.constant 0 : index
    %36 = vector.load %arg4[%35, %c0_10, %c0_11] : memref<8x8x32xf32, #tpu.memory_space<vmem>>, vector<1x8x32xf32>
    %37 = vector.shape_cast %36 : vector<1x8x32xf32> to vector<8x32xf32>
    %38 = vector.shape_cast %34 : vector<8x32xf32> to vector<1x8x32xf32>
    tpu.vector_store %arg4[%35, %c0_10, %c0_11], %38 {strides = array<i32>} : memref<8x8x32xf32, #tpu.memory_space<vmem>>, vector<1x8x32xf32>,
    %c1_i32 = arith.constant 1 : i32
    %39 = arith.index_cast %c1_i32 : i32 to index
    %c0_12 = arith.constant 0 : index
    %c0_13 = arith.constant 0 : index
    %40 = vector.load %arg1[%39, %c0_12, %c0_13] : memref<8x8x128xf32, #tpu.memory_space<vmem>>, vector<1x8x128xf32>
    %41 = vector.shape_cast %40 : vector<1x8x128xf32> to vector<8x128xf32>
    %cst_14 = arith.constant dense<0.000000e+00> : vector<8x128xf32>
    %42 = tpu.matmul %34, %3, %cst_14 {dimension_numbers = #tpu.dot_dimension_numbers<[1], [0], [0], [1], [0, 0, 1, 1], [], []>} : vector<8x32xf32>, vector<32x128xf32>, vector<8x128xf32> -> vector<8x128xf32>
    %43 = arith.addf %41, %42 : vector<8x128xf32>
    %44 = vector.extract_strided_slice %43 {offsets = [0, 0], sizes = [8, 32], strides = [1, 1]} : vector<8x128xf32> to vector<8x32xf32>
    %45 = arith.negf %44 : vector<8x32xf32>
    %46 = math.exp %45 : vector<8x32xf32>
    %cst_15 = arith.constant 1.000000e+00 : f32
    %47 = vector.broadcast %cst_15 : f32 to vector<8x32xf32>
    %48 = arith.addf %47, %46 : vector<8x32xf32>
    %49 = arith.divf %47, %48 : vector<8x32xf32>
    %50 = vector.extract_strided_slice %43 {offsets = [0, 32], sizes = [8, 32], strides = [1, 1]} : vector<8x128xf32> to vector<8x32xf32>
    %51 = arith.negf %50 : vector<8x32xf32>
    %52 = math.exp %51 : vector<8x32xf32>
    %cst_16 = arith.constant 1.000000e+00 : f32
    %53 = vector.broadcast %cst_16 : f32 to vector<8x32xf32>
    %54 = arith.addf %53, %52 : vector<8x32xf32>
    %55 = arith.divf %53, %54 : vector<8x32xf32>
    %56 = vector.extract_strided_slice %43 {offsets = [0, 64], sizes = [8, 32], strides = [1, 1]} : vector<8x128xf32> to vector<8x32xf32>
    %57 = arith.negf %56 : vector<8x32xf32>
    %58 = math.exp %57 : vector<8x32xf32>
    %cst_17 = arith.constant 1.000000e+00 : f32
    %59 = vector.broadcast %cst_17 : f32 to vector<8x32xf32>
    %60 = arith.addf %59, %58 : vector<8x32xf32>
    %61 = arith.divf %59, %60 : vector<8x32xf32>
    %62 = vector.extract_strided_slice %43 {offsets = [0, 96], sizes = [8, 32], strides = [1, 1]} : vector<8x128xf32> to vector<8x32xf32>
    %63 = math.tanh %62 : vector<8x32xf32>
    %64 = arith.mulf %49, %34 : vector<8x32xf32>
    %65 = arith.mulf %55, %63 : vector<8x32xf32>
    %66 = arith.addf %64, %65 : vector<8x32xf32>
    %67 = math.tanh %66 : vector<8x32xf32>
    %68 = arith.mulf %61, %67 : vector<8x32xf32>
    %69 = arith.index_cast %c1_i32 : i32 to index
    %c0_18 = arith.constant 0 : index
    %c0_19 = arith.constant 0 : index
    %70 = vector.load %arg4[%69, %c0_18, %c0_19] : memref<8x8x32xf32, #tpu.memory_space<vmem>>, vector<1x8x32xf32>
    %71 = vector.shape_cast %70 : vector<1x8x32xf32> to vector<8x32xf32>
    %72 = vector.shape_cast %68 : vector<8x32xf32> to vector<1x8x32xf32>
    tpu.vector_store %arg4[%69, %c0_18, %c0_19], %72 {strides = array<i32>} : memref<8x8x32xf32, #tpu.memory_space<vmem>>, vector<1x8x32xf32>,
    %c2_i32 = arith.constant 2 : i32
    %73 = arith.index_cast %c2_i32 : i32 to index
    %c0_20 = arith.constant 0 : index
    %c0_21 = arith.constant 0 : index
    %74 = vector.load %arg1[%73, %c0_20, %c0_21] : memref<8x8x128xf32, #tpu.memory_space<vmem>>, vector<1x8x128xf32>
    %75 = vector.shape_cast %74 : vector<1x8x128xf32> to vector<8x128xf32>
    %cst_22 = arith.constant dense<0.000000e+00> : vector<8x128xf32>
    %76 = tpu.matmul %68, %3, %cst_22 {dimension_numbers = #tpu.dot_dimension_numbers<[1], [0], [0], [1], [0, 0, 1, 1], [], []>} : vector<8x32xf32>, vector<32x128xf32>, vector<8x128xf32> -> vector<8x128xf32>
    %77 = arith.addf %75, %76 : vector<8x128xf32>
    %78 = vector.extract_strided_slice %77 {offsets = [0, 0], sizes = [8, 32], strides = [1, 1]} : vector<8x128xf32> to vector<8x32xf32>
    %79 = arith.negf %78 : vector<8x32xf32>
    %80 = math.exp %79 : vector<8x32xf32>
    %cst_23 = arith.constant 1.000000e+00 : f32
    %81 = vector.broadcast %cst_23 : f32 to vector<8x32xf32>
    %82 = arith.addf %81, %80 : vector<8x32xf32>
    %83 = arith.divf %81, %82 : vector<8x32xf32>
    %84 = vector.extract_strided_slice %77 {offsets = [0, 32], sizes = [8, 32], strides = [1, 1]} : vector<8x128xf32> to vector<8x32xf32>
    %85 = arith.negf %84 : vector<8x32xf32>
    %86 = math.exp %85 : vector<8x32xf32>
    %cst_24 = arith.constant 1.000000e+00 : f32
    %87 = vector.broadcast %cst_24 : f32 to vector<8x32xf32>
    %88 = arith.addf %87, %86 : vector<8x32xf32>
    %89 = arith.divf %87, %88 : vector<8x32xf32>
    %90 = vector.extract_strided_slice %77 {offsets = [0, 64], sizes = [8, 32], strides = [1, 1]} : vector<8x128xf32> to vector<8x32xf32>
    %91 = arith.negf %90 : vector<8x32xf32>
    %92 = math.exp %91 : vector<8x32xf32>
    %cst_25 = arith.constant 1.000000e+00 : f32
    %93 = vector.broadcast %cst_25 : f32 to vector<8x32xf32>
    %94 = arith.addf %93, %92 : vector<8x32xf32>
    %95 = arith.divf %93, %94 : vector<8x32xf32>
    %96 = vector.extract_strided_slice %77 {offsets = [0, 96], sizes = [8, 32], strides = [1, 1]} : vector<8x128xf32> to vector<8x32xf32>
    %97 = math.tanh %96 : vector<8x32xf32>
    %98 = arith.mulf %83, %68 : vector<8x32xf32>
    %99 = arith.mulf %89, %97 : vector<8x32xf32>
    %100 = arith.addf %98, %99 : vector<8x32xf32>
    %101 = math.tanh %100 : vector<8x32xf32>
    %102 = arith.mulf %95, %101 : vector<8x32xf32>
    %103 = arith.index_cast %c2_i32 : i32 to index
    %c0_26 = arith.constant 0 : index
    %c0_27 = arith.constant 0 : index
    %104 = vector.load %arg4[%103, %c0_26, %c0_27] : memref<8x8x32xf32, #tpu.memory_space<vmem>>, vector<1x8x32xf32>
    %105 = vector.shape_cast %104 : vector<1x8x32xf32> to vector<8x32xf32>
    %106 = vector.shape_cast %102 : vector<8x32xf32> to vector<1x8x32xf32>
    tpu.vector_store %arg4[%103, %c0_26, %c0_27], %106 {strides = array<i32>} : memref<8x8x32xf32, #tpu.memory_space<vmem>>, vector<1x8x32xf32>,
    %c3_i32 = arith.constant 3 : i32
    %107 = arith.index_cast %c3_i32 : i32 to index
    %c0_28 = arith.constant 0 : index
    %c0_29 = arith.constant 0 : index
    %108 = vector.load %arg1[%107, %c0_28, %c0_29] : memref<8x8x128xf32, #tpu.memory_space<vmem>>, vector<1x8x128xf32>
    %109 = vector.shape_cast %108 : vector<1x8x128xf32> to vector<8x128xf32>
    %cst_30 = arith.constant dense<0.000000e+00> : vector<8x128xf32>
    %110 = tpu.matmul %102, %3, %cst_30 {dimension_numbers = #tpu.dot_dimension_numbers<[1], [0], [0], [1], [0, 0, 1, 1], [], []>} : vector<8x32xf32>, vector<32x128xf32>, vector<8x128xf32> -> vector<8x128xf32>
    %111 = arith.addf %109, %110 : vector<8x128xf32>
    %112 = vector.extract_strided_slice %111 {offsets = [0, 0], sizes = [8, 32], strides = [1, 1]} : vector<8x128xf32> to vector<8x32xf32>
    %113 = arith.negf %112 : vector<8x32xf32>
    %114 = math.exp %113 : vector<8x32xf32>
    %cst_31 = arith.constant 1.000000e+00 : f32
    %115 = vector.broadcast %cst_31 : f32 to vector<8x32xf32>
    %116 = arith.addf %115, %114 : vector<8x32xf32>
    %117 = arith.divf %115, %116 : vector<8x32xf32>
    %118 = vector.extract_strided_slice %111 {offsets = [0, 32], sizes = [8, 32], strides = [1, 1]} : vector<8x128xf32> to vector<8x32xf32>
    %119 = arith.negf %118 : vector<8x32xf32>
    %120 = math.exp %119 : vector<8x32xf32>
    %cst_32 = arith.constant 1.000000e+00 : f32
    %121 = vector.broadcast %cst_32 : f32 to vector<8x32xf32>
    %122 = arith.addf %121, %120 : vector<8x32xf32>
    %123 = arith.divf %121, %122 : vector<8x32xf32>
    %124 = vector.extract_strided_slice %111 {offsets = [0, 64], sizes = [8, 32], strides = [1, 1]} : vector<8x128xf32> to vector<8x32xf32>
    %125 = arith.negf %124 : vector<8x32xf32>
    %126 = math.exp %125 : vector<8x32xf32>
    %cst_33 = arith.constant 1.000000e+00 : f32
    %127 = vector.broadcast %cst_33 : f32 to vector<8x32xf32>
    %128 = arith.addf %127, %126 : vector<8x32xf32>
    %129 = arith.divf %127, %128 : vector<8x32xf32>
    %130 = vector.extract_strided_slice %111 {offsets = [0, 96], sizes = [8, 32], strides = [1, 1]} : vector<8x128xf32> to vector<8x32xf32>
    %131 = math.tanh %130 : vector<8x32xf32>
    %132 = arith.mulf %117, %102 : vector<8x32xf32>
    %133 = arith.mulf %123, %131 : vector<8x32xf32>
    %134 = arith.addf %132, %133 : vector<8x32xf32>
    %135 = math.tanh %134 : vector<8x32xf32>
    %136 = arith.mulf %129, %135 : vector<8x32xf32>
    %137 = arith.index_cast %c3_i32 : i32 to index
    %c0_34 = arith.constant 0 : index
    %c0_35 = arith.constant 0 : index
    %138 = vector.load %arg4[%137, %c0_34, %c0_35] : memref<8x8x32xf32, #tpu.memory_space<vmem>>, vector<1x8x32xf32>
    %139 = vector.shape_cast %138 : vector<1x8x32xf32> to vector<8x32xf32>
    %140 = vector.shape_cast %136 : vector<8x32xf32> to vector<1x8x32xf32>
    tpu.vector_store %arg4[%137, %c0_34, %c0_35], %140 {strides = array<i32>} : memref<8x8x32xf32, #tpu.memory_space<vmem>>, vector<1x8x32xf32>,
    %c4_i32 = arith.constant 4 : i32
    %141 = arith.index_cast %c4_i32 : i32 to index
    %c0_36 = arith.constant 0 : index
    %c0_37 = arith.constant 0 : index
    %142 = vector.load %arg1[%141, %c0_36, %c0_37] : memref<8x8x128xf32, #tpu.memory_space<vmem>>, vector<1x8x128xf32>
    %143 = vector.shape_cast %142 : vector<1x8x128xf32> to vector<8x128xf32>
    %cst_38 = arith.constant dense<0.000000e+00> : vector<8x128xf32>
    %144 = tpu.matmul %136, %3, %cst_38 {dimension_numbers = #tpu.dot_dimension_numbers<[1], [0], [0], [1], [0, 0, 1, 1], [], []>} : vector<8x32xf32>, vector<32x128xf32>, vector<8x128xf32> -> vector<8x128xf32>
    %145 = arith.addf %143, %144 : vector<8x128xf32>
    %146 = vector.extract_strided_slice %145 {offsets = [0, 0], sizes = [8, 32], strides = [1, 1]} : vector<8x128xf32> to vector<8x32xf32>
    %147 = arith.negf %146 : vector<8x32xf32>
    %148 = math.exp %147 : vector<8x32xf32>
    %cst_39 = arith.constant 1.000000e+00 : f32
    %149 = vector.broadcast %cst_39 : f32 to vector<8x32xf32>
    %150 = arith.addf %149, %148 : vector<8x32xf32>
    %151 = arith.divf %149, %150 : vector<8x32xf32>
    %152 = vector.extract_strided_slice %145 {offsets = [0, 32], sizes = [8, 32], strides = [1, 1]} : vector<8x128xf32> to vector<8x32xf32>
    %153 = arith.negf %152 : vector<8x32xf32>
    %154 = math.exp %153 : vector<8x32xf32>
    %cst_40 = arith.constant 1.000000e+00 : f32
    %155 = vector.broadcast %cst_40 : f32 to vector<8x32xf32>
    %156 = arith.addf %155, %154 : vector<8x32xf32>
    %157 = arith.divf %155, %156 : vector<8x32xf32>
    %158 = vector.extract_strided_slice %145 {offsets = [0, 64], sizes = [8, 32], strides = [1, 1]} : vector<8x128xf32> to vector<8x32xf32>
    %159 = arith.negf %158 : vector<8x32xf32>
    %160 = math.exp %159 : vector<8x32xf32>
    %cst_41 = arith.constant 1.000000e+00 : f32
    %161 = vector.broadcast %cst_41 : f32 to vector<8x32xf32>
    %162 = arith.addf %161, %160 : vector<8x32xf32>
    %163 = arith.divf %161, %162 : vector<8x32xf32>
    %164 = vector.extract_strided_slice %145 {offsets = [0, 96], sizes = [8, 32], strides = [1, 1]} : vector<8x128xf32> to vector<8x32xf32>
    %165 = math.tanh %164 : vector<8x32xf32>
    %166 = arith.mulf %151, %136 : vector<8x32xf32>
    %167 = arith.mulf %157, %165 : vector<8x32xf32>
    %168 = arith.addf %166, %167 : vector<8x32xf32>
    %169 = math.tanh %168 : vector<8x32xf32>
    %170 = arith.mulf %163, %169 : vector<8x32xf32>
    %171 = arith.index_cast %c4_i32 : i32 to index
    %c0_42 = arith.constant 0 : index
    %c0_43 = arith.constant 0 : index
    %172 = vector.load %arg4[%171, %c0_42, %c0_43] : memref<8x8x32xf32, #tpu.memory_space<vmem>>, vector<1x8x32xf32>
    %173 = vector.shape_cast %172 : vector<1x8x32xf32> to vector<8x32xf32>
    %174 = vector.shape_cast %170 : vector<8x32xf32> to vector<1x8x32xf32>
    tpu.vector_store %arg4[%171, %c0_42, %c0_43], %174 {strides = array<i32>} : memref<8x8x32xf32, #tpu.memory_space<vmem>>, vector<1x8x32xf32>,
    %c5_i32 = arith.constant 5 : i32
    %175 = arith.index_cast %c5_i32 : i32 to index
    %c0_44 = arith.constant 0 : index
    %c0_45 = arith.constant 0 : index
    %176 = vector.load %arg1[%175, %c0_44, %c0_45] : memref<8x8x128xf32, #tpu.memory_space<vmem>>, vector<1x8x128xf32>
    %177 = vector.shape_cast %176 : vector<1x8x128xf32> to vector<8x128xf32>
    %cst_46 = arith.constant dense<0.000000e+00> : vector<8x128xf32>
    %178 = tpu.matmul %170, %3, %cst_46 {dimension_numbers = #tpu.dot_dimension_numbers<[1], [0], [0], [1], [0, 0, 1, 1], [], []>} : vector<8x32xf32>, vector<32x128xf32>, vector<8x128xf32> -> vector<8x128xf32>
    %179 = arith.addf %177, %178 : vector<8x128xf32>
    %180 = vector.extract_strided_slice %179 {offsets = [0, 0], sizes = [8, 32], strides = [1, 1]} : vector<8x128xf32> to vector<8x32xf32>
    %181 = arith.negf %180 : vector<8x32xf32>
    %182 = math.exp %181 : vector<8x32xf32>
    %cst_47 = arith.constant 1.000000e+00 : f32
    %183 = vector.broadcast %cst_47 : f32 to vector<8x32xf32>
    %184 = arith.addf %183, %182 : vector<8x32xf32>
    %185 = arith.divf %183, %184 : vector<8x32xf32>
    %186 = vector.extract_strided_slice %179 {offsets = [0, 32], sizes = [8, 32], strides = [1, 1]} : vector<8x128xf32> to vector<8x32xf32>
    %187 = arith.negf %186 : vector<8x32xf32>
    %188 = math.exp %187 : vector<8x32xf32>
    %cst_48 = arith.constant 1.000000e+00 : f32
    %189 = vector.broadcast %cst_48 : f32 to vector<8x32xf32>
    %190 = arith.addf %189, %188 : vector<8x32xf32>
    %191 = arith.divf %189, %190 : vector<8x32xf32>
    %192 = vector.extract_strided_slice %179 {offsets = [0, 64], sizes = [8, 32], strides = [1, 1]} : vector<8x128xf32> to vector<8x32xf32>
    %193 = arith.negf %192 : vector<8x32xf32>
    %194 = math.exp %193 : vector<8x32xf32>
    %cst_49 = arith.constant 1.000000e+00 : f32
    %195 = vector.broadcast %cst_49 : f32 to vector<8x32xf32>
    %196 = arith.addf %195, %194 : vector<8x32xf32>
    %197 = arith.divf %195, %196 : vector<8x32xf32>
    %198 = vector.extract_strided_slice %179 {offsets = [0, 96], sizes = [8, 32], strides = [1, 1]} : vector<8x128xf32> to vector<8x32xf32>
    %199 = math.tanh %198 : vector<8x32xf32>
    %200 = arith.mulf %185, %170 : vector<8x32xf32>
    %201 = arith.mulf %191, %199 : vector<8x32xf32>
    %202 = arith.addf %200, %201 : vector<8x32xf32>
    %203 = math.tanh %202 : vector<8x32xf32>
    %204 = arith.mulf %197, %203 : vector<8x32xf32>
    %205 = arith.index_cast %c5_i32 : i32 to index
    %c0_50 = arith.constant 0 : index
    %c0_51 = arith.constant 0 : index
    %206 = vector.load %arg4[%205, %c0_50, %c0_51] : memref<8x8x32xf32, #tpu.memory_space<vmem>>, vector<1x8x32xf32>
    %207 = vector.shape_cast %206 : vector<1x8x32xf32> to vector<8x32xf32>
    %208 = vector.shape_cast %204 : vector<8x32xf32> to vector<1x8x32xf32>
    tpu.vector_store %arg4[%205, %c0_50, %c0_51], %208 {strides = array<i32>} : memref<8x8x32xf32, #tpu.memory_space<vmem>>, vector<1x8x32xf32>,
    %c6_i32 = arith.constant 6 : i32
    %209 = arith.index_cast %c6_i32 : i32 to index
    %c0_52 = arith.constant 0 : index
    %c0_53 = arith.constant 0 : index
    %210 = vector.load %arg1[%209, %c0_52, %c0_53] : memref<8x8x128xf32, #tpu.memory_space<vmem>>, vector<1x8x128xf32>
    %211 = vector.shape_cast %210 : vector<1x8x128xf32> to vector<8x128xf32>
    %cst_54 = arith.constant dense<0.000000e+00> : vector<8x128xf32>
    %212 = tpu.matmul %204, %3, %cst_54 {dimension_numbers = #tpu.dot_dimension_numbers<[1], [0], [0], [1], [0, 0, 1, 1], [], []>} : vector<8x32xf32>, vector<32x128xf32>, vector<8x128xf32> -> vector<8x128xf32>
    %213 = arith.addf %211, %212 : vector<8x128xf32>
    %214 = vector.extract_strided_slice %213 {offsets = [0, 0], sizes = [8, 32], strides = [1, 1]} : vector<8x128xf32> to vector<8x32xf32>
    %215 = arith.negf %214 : vector<8x32xf32>
    %216 = math.exp %215 : vector<8x32xf32>
    %cst_55 = arith.constant 1.000000e+00 : f32
    %217 = vector.broadcast %cst_55 : f32 to vector<8x32xf32>
    %218 = arith.addf %217, %216 : vector<8x32xf32>
    %219 = arith.divf %217, %218 : vector<8x32xf32>
    %220 = vector.extract_strided_slice %213 {offsets = [0, 32], sizes = [8, 32], strides = [1, 1]} : vector<8x128xf32> to vector<8x32xf32>
    %221 = arith.negf %220 : vector<8x32xf32>
    %222 = math.exp %221 : vector<8x32xf32>
    %cst_56 = arith.constant 1.000000e+00 : f32
    %223 = vector.broadcast %cst_56 : f32 to vector<8x32xf32>
    %224 = arith.addf %223, %222 : vector<8x32xf32>
    %225 = arith.divf %223, %224 : vector<8x32xf32>
    %226 = vector.extract_strided_slice %213 {offsets = [0, 64], sizes = [8, 32], strides = [1, 1]} : vector<8x128xf32> to vector<8x32xf32>
    %227 = arith.negf %226 : vector<8x32xf32>
    %228 = math.exp %227 : vector<8x32xf32>
    %cst_57 = arith.constant 1.000000e+00 : f32
    %229 = vector.broadcast %cst_57 : f32 to vector<8x32xf32>
    %230 = arith.addf %229, %228 : vector<8x32xf32>
    %231 = arith.divf %229, %230 : vector<8x32xf32>
    %232 = vector.extract_strided_slice %213 {offsets = [0, 96], sizes = [8, 32], strides = [1, 1]} : vector<8x128xf32> to vector<8x32xf32>
    %233 = math.tanh %232 : vector<8x32xf32>
    %234 = arith.mulf %219, %204 : vector<8x32xf32>
    %235 = arith.mulf %225, %233 : vector<8x32xf32>
    %236 = arith.addf %234, %235 : vector<8x32xf32>
    %237 = math.tanh %236 : vector<8x32xf32>
    %238 = arith.mulf %231, %237 : vector<8x32xf32>
    %239 = arith.index_cast %c6_i32 : i32 to index
    %c0_58 = arith.constant 0 : index
    %c0_59 = arith.constant 0 : index
    %240 = vector.load %arg4[%239, %c0_58, %c0_59] : memref<8x8x32xf32, #tpu.memory_space<vmem>>, vector<1x8x32xf32>
    %241 = vector.shape_cast %240 : vector<1x8x32xf32> to vector<8x32xf32>
    %242 = vector.shape_cast %238 : vector<8x32xf32> to vector<1x8x32xf32>
    tpu.vector_store %arg4[%239, %c0_58, %c0_59], %242 {strides = array<i32>} : memref<8x8x32xf32, #tpu.memory_space<vmem>>, vector<1x8x32xf32>,
    %c7_i32 = arith.constant 7 : i32
    %243 = arith.index_cast %c7_i32 : i32 to index
    %c0_60 = arith.constant 0 : index
    %c0_61 = arith.constant 0 : index
    %244 = vector.load %arg1[%243, %c0_60, %c0_61] : memref<8x8x128xf32, #tpu.memory_space<vmem>>, vector<1x8x128xf32>
    %245 = vector.shape_cast %244 : vector<1x8x128xf32> to vector<8x128xf32>
    %cst_62 = arith.constant dense<0.000000e+00> : vector<8x128xf32>
    %246 = tpu.matmul %238, %3, %cst_62 {dimension_numbers = #tpu.dot_dimension_numbers<[1], [0], [0], [1], [0, 0, 1, 1], [], []>} : vector<8x32xf32>, vector<32x128xf32>, vector<8x128xf32> -> vector<8x128xf32>
    %247 = arith.addf %245, %246 : vector<8x128xf32>
    %248 = vector.extract_strided_slice %247 {offsets = [0, 0], sizes = [8, 32], strides = [1, 1]} : vector<8x128xf32> to vector<8x32xf32>
    %249 = arith.negf %248 : vector<8x32xf32>
    %250 = math.exp %249 : vector<8x32xf32>
    %cst_63 = arith.constant 1.000000e+00 : f32
    %251 = vector.broadcast %cst_63 : f32 to vector<8x32xf32>
    %252 = arith.addf %251, %250 : vector<8x32xf32>
    %253 = arith.divf %251, %252 : vector<8x32xf32>
    %254 = vector.extract_strided_slice %247 {offsets = [0, 32], sizes = [8, 32], strides = [1, 1]} : vector<8x128xf32> to vector<8x32xf32>
    %255 = arith.negf %254 : vector<8x32xf32>
    %256 = math.exp %255 : vector<8x32xf32>
    %cst_64 = arith.constant 1.000000e+00 : f32
    %257 = vector.broadcast %cst_64 : f32 to vector<8x32xf32>
    %258 = arith.addf %257, %256 : vector<8x32xf32>
    %259 = arith.divf %257, %258 : vector<8x32xf32>
    %260 = vector.extract_strided_slice %247 {offsets = [0, 64], sizes = [8, 32], strides = [1, 1]} : vector<8x128xf32> to vector<8x32xf32>
    %261 = arith.negf %260 : vector<8x32xf32>
    %262 = math.exp %261 : vector<8x32xf32>
    %cst_65 = arith.constant 1.000000e+00 : f32
    %263 = vector.broadcast %cst_65 : f32 to vector<8x32xf32>
    %264 = arith.addf %263, %262 : vector<8x32xf32>
    %265 = arith.divf %263, %264 : vector<8x32xf32>
    %266 = vector.extract_strided_slice %247 {offsets = [0, 96], sizes = [8, 32], strides = [1, 1]} : vector<8x128xf32> to vector<8x32xf32>
    %267 = math.tanh %266 : vector<8x32xf32>
    %268 = arith.mulf %253, %238 : vector<8x32xf32>
    %269 = arith.mulf %259, %267 : vector<8x32xf32>
    %270 = arith.addf %268, %269 : vector<8x32xf32>
    %271 = math.tanh %270 : vector<8x32xf32>
    %272 = arith.mulf %265, %271 : vector<8x32xf32>
    %273 = arith.index_cast %c7_i32 : i32 to index
    %c0_66 = arith.constant 0 : index
    %c0_67 = arith.constant 0 : index
    %274 = vector.load %arg4[%273, %c0_66, %c0_67] : memref<8x8x32xf32, #tpu.memory_space<vmem>>, vector<1x8x32xf32>
    %275 = vector.shape_cast %274 : vector<1x8x32xf32> to vector<8x32xf32>
    %276 = vector.shape_cast %272 : vector<8x32xf32> to vector<1x8x32xf32>
    tpu.vector_store %arg4[%273, %c0_66, %c0_67], %276 {strides = array<i32>} : memref<8x8x32xf32, #tpu.memory_space<vmem>>, vector<1x8x32xf32>,
    %c8_i32 = arith.constant 8 : i32
    %c0_68 = arith.constant 0 : index
    %c0_69 = arith.constant 0 : index
    %277 = vector.load %arg5[%c0_68, %c0_69] : memref<8x32xf32, #tpu.memory_space<vmem>>, vector<8x32xf32>
    tpu.vector_store %arg5[%c0_68, %c0_69], %272 {strides = array<i32>} : memref<8x32xf32, #tpu.memory_space<vmem>>, vector<8x32xf32>,
    return
  }
  func.func @transform_0(%arg0: i32) -> (i32, i32, i32) {
    %c0_i32 = arith.constant 0 : i32
    %c0_i32_0 = arith.constant 0 : i32
    %c0_i32_1 = arith.constant 0 : i32
    return %arg0, %c0_i32, %c0_i32_0 : i32, i32, i32
  }
  func.func @transform_1(%arg0: i32) -> (i32, i32) {
    %c0_i32 = arith.constant 0 : i32
    %c0_i32_0 = arith.constant 0 : i32
    %c0_i32_1 = arith.constant 0 : i32
    return %c0_i32, %c0_i32_0 : i32, i32
  }
  func.func @transform_2(%arg0: i32) -> (i32, i32) {
    %c0_i32 = arith.constant 0 : i32
    %c0_i32_0 = arith.constant 0 : i32
    %c0_i32_1 = arith.constant 0 : i32
    return %c0_i32, %c0_i32_0 : i32, i32
  }
  func.func @transform_3(%arg0: i32) -> (i32, i32, i32) {
    %c0_i32 = arith.constant 0 : i32
    %c0_i32_0 = arith.constant 0 : i32
    %c0_i32_1 = arith.constant 0 : i32
    return %arg0, %c0_i32, %c0_i32_0 : i32, i32, i32
  }
}

module attributes {stable_mosaic.version = 11 : i64} {
  func.func @_head_softmax_kernel(%arg0: i32, %arg1: memref<64x32xf32, #tpu.memory_space<vmem>>, %arg2: memref<32x4xf32, #tpu.memory_space<vmem>>, %arg3: memref<1x4xf32, #tpu.memory_space<vmem>>, %arg4: memref<64x4xf32, #tpu.memory_space<vmem>>) attributes {dimension_semantics = [#tpu.dimension_semantics<arbitrary>], iteration_bounds = array<i64: 1>, scalar_prefetch = 0 : i64, scratch_operands = 0 : i64, tpu.core_type = #tpu.core_type<tc>, window_params = [{pipeline_mode = #tpu.pipeline_mode<synchronous>, transform_indices = @transform_0, window_bounds = array<i64: 64, 32>}, {pipeline_mode = #tpu.pipeline_mode<synchronous>, transform_indices = @transform_1, window_bounds = array<i64: 32, 4>}, {pipeline_mode = #tpu.pipeline_mode<synchronous>, transform_indices = @transform_2, window_bounds = array<i64: 1, 4>}, {pipeline_mode = #tpu.pipeline_mode<synchronous>, transform_indices = @transform_3, window_bounds = array<i64: 64, 4>}]} {
    %c0 = arith.constant 0 : index
    %c0_0 = arith.constant 0 : index
    %0 = vector.load %arg1[%c0, %c0_0] : memref<64x32xf32, #tpu.memory_space<vmem>>, vector<64x32xf32>
    %c0_1 = arith.constant 0 : index
    %c0_2 = arith.constant 0 : index
    %1 = vector.load %arg2[%c0_1, %c0_2] : memref<32x4xf32, #tpu.memory_space<vmem>>, vector<32x4xf32>
    %cst = arith.constant dense<0.000000e+00> : vector<64x4xf32>
    %2 = tpu.matmul %0, %1, %cst {dimension_numbers = #tpu.dot_dimension_numbers<[1], [0], [0], [1], [0, 0, 1, 1], [], []>} : vector<64x32xf32>, vector<32x4xf32>, vector<64x4xf32> -> vector<64x4xf32>
    %c0_3 = arith.constant 0 : index
    %c0_4 = arith.constant 0 : index
    %3 = vector.load %arg3[%c0_3, %c0_4] : memref<1x4xf32, #tpu.memory_space<vmem>>, vector<1x4xf32>
    %4 = vector.broadcast %3 : vector<1x4xf32> to vector<64x4xf32>
    %5 = arith.addf %2, %4 : vector<64x4xf32>
    %cst_5 = arith.constant dense<0xFF800000> : vector<64xf32>
    %6 = vector.multi_reduction <maximumf>, %5, %cst_5 [1] : vector<64x4xf32> to vector<64xf32>
    %7 = vector.shape_cast %6 : vector<64xf32> to vector<64x1xf32>
    %8 = vector.broadcast %7 : vector<64x1xf32> to vector<64x4xf32>
    %9 = arith.subf %5, %8 : vector<64x4xf32>
    %10 = math.exp %9 : vector<64x4xf32>
    %cst_6 = arith.constant dense<0.000000e+00> : vector<64xf32>
    %11 = vector.multi_reduction <add>, %10, %cst_6 [1] : vector<64x4xf32> to vector<64xf32>
    %12 = vector.shape_cast %11 : vector<64xf32> to vector<64x1xf32>
    %13 = tpu.reciprocal %12 {approx = true} : vector<64x1xf32> -> vector<64x1xf32>
    %14 = vector.broadcast %13 : vector<64x1xf32> to vector<64x4xf32>
    %15 = arith.mulf %10, %14 : vector<64x4xf32>
    %c0_7 = arith.constant 0 : index
    %c0_8 = arith.constant 0 : index
    %16 = vector.load %arg4[%c0_7, %c0_8] : memref<64x4xf32, #tpu.memory_space<vmem>>, vector<64x4xf32>
    tpu.vector_store %arg4[%c0_7, %c0_8], %15 {strides = array<i32>} : memref<64x4xf32, #tpu.memory_space<vmem>>, vector<64x4xf32>,
    return
  }
  func.func @transform_0(%arg0: i32) -> (i32, i32) {
    %c0_i32 = arith.constant 0 : i32
    %c0_i32_0 = arith.constant 0 : i32
    %c0_i32_1 = arith.constant 0 : i32
    return %c0_i32, %c0_i32_0 : i32, i32
  }
  func.func @transform_1(%arg0: i32) -> (i32, i32) {
    %c0_i32 = arith.constant 0 : i32
    %c0_i32_0 = arith.constant 0 : i32
    %c0_i32_1 = arith.constant 0 : i32
    return %c0_i32, %c0_i32_0 : i32, i32
  }
  func.func @transform_2(%arg0: i32) -> (i32, i32) {
    %c0_i32 = arith.constant 0 : i32
    %c0_i32_0 = arith.constant 0 : i32
    %c0_i32_1 = arith.constant 0 : i32
    return %c0_i32, %c0_i32_0 : i32, i32
  }
  func.func @transform_3(%arg0: i32) -> (i32, i32) {
    %c0_i32 = arith.constant 0 : i32
    %c0_i32_0 = arith.constant 0 : i32
    %c0_i32_1 = arith.constant 0 : i32
    return %c0_i32, %c0_i32_0 : i32, i32
  }
}

</mosaic_0001>

<llo_original>
// kernel: lstm_forward.3
$region0: #{lstm_forward.3}
  #allocation0 [shape = 'u32[]', space=smem, size = 0x4, offset = 0x4, fixed_abs, tag = 'smem constant byte address 0x4 - core index']
  #allocation1 [shape = 'u32[144,128]{1,0:T(1,128)}', space=vmem, size = 0x12000, scoped, tag = 'internal scratch']
  %s0 = inlined_call_operand.vmem [shape: f32[64,4], index: 0, kind: input, shape index: {}]
  %s1 = inlined_call_operand.vmem [shape: f32[4,128], index: 1, kind: input, shape index: {}]
  %s2 = inlined_call_operand.vmem [shape: f32[1,128], index: 2, kind: input, shape index: {}]
  %s3 = inlined_call_operand.vmem [shape: f32[64,128], index: 3, kind: output, shape index: {}]
  %s4 = sld [smem:[#allocation0]]
  $region22: #{lstm_forward.3} parent=0
    _
  %s6 = ssub.s32 1, %s4
  %s7 = scalar_select 0, %s6, %s4
  // Predicated region
  $region2: #{lstm_forward.3} parent=0 // pred_check
    _
  $region3: #{lstm_forward.3} parent=0 // pred_check_branch
    %9 = sbr.rel (0) target = $region5
  $region4: #{lstm_forward.3} parent=0 // pred_region
    _
  $region5: #{lstm_forward.3} parent=0 // pred_fallthru
    _
  // Predicated region
  $region6: #{lstm_forward.3} parent=0 // pred_check
    _
  $region7: #{lstm_forward.3} parent=0 // pred_check_branch
    %11 = sbr.rel (0) target = $region9
  $region8: #{lstm_forward.3} parent=0 // pred_region
    _
  $region9: #{lstm_forward.3} parent=0 // pred_fallthru
    _
  // Predicated region
  $region10: #{lstm_forward.3} parent=0 // pred_check
    _
  $region11: #{lstm_forward.3} parent=0 // pred_check_branch
    %13 = sbr.rel (0) target = $region13
  $region12: #{lstm_forward.3} parent=0 // pred_region
    _
  $region13: #{lstm_forward.3} parent=0 // pred_fallthru
    _
  %v14 = vld [vmem:[%s0] sm:$0xff]
  %v15 = vld [vmem:[%s0 + $0x8] sm:$0xff]
  %v16 = vld [vmem:[%s0 + $0x10] sm:$0xff]
  %v17 = vld [vmem:[%s0 + $0x18] sm:$0xff]
  %v18 = vld [vmem:[%s0 + $0x20] sm:$0xff]
  %v19 = vld [vmem:[%s0 + $0x28] sm:$0xff]
  %v20 = vld [vmem:[%s0 + $0x30] sm:$0xff]
  %v21 = vld [vmem:[%s0 + $0x38] sm:$0xff]
  %v22 = vld [vmem:[%s1] sm:$0xf]
  %v23 = vld [vmem:[%s2] sm:$0x1]
  %v25 = vlaneseq
  %v26 = vshrl.u32 %v25, 7
  %v27 = vsub.s32 0, %v26
  %v28 = vrot.slane %v23, %v27
  %vm30 = vcmask 31744
  %v32 = vsel %vm30, %v14, 0
  %v35 = vsel %vm30, %v15, 0
  %v38 = vsel %vm30, %v16, 0
  %v41 = vsel %vm30, %v17, 0
  %v44 = vsel %vm30, %v18, 0
  %v47 = vsel %vm30, %v19, 0
  %v50 = vsel %vm30, %v20, 0
  %v53 = vsel %vm30, %v21, 0
  %vm55 = vcmask 1043456
  %v57 = vsel %vm55, %v22, 0
  %59 = vmatprep.subr.mxu0 0.0
  %60 = vmatpush1.msra.mxu0 %v57
  %61 = vmatprep.subr.mxu0 0.0
  %62 = vmatpush1.msra.mxu0 0.0
  %63 = vmatprep.subr.mxu0 0.0
  %64 = vmatpush1.msra.mxu0 0.0
  %65 = vmatprep.subr.mxu0 0.0
  %66 = vmatpush1.msra.mxu0 0.0
  %67 = vmatprep.subr.mxu0 0.0
  %68 = vmatpush1.msra.mxu0 0.0
  %69 = vmatprep.subr.mxu0 0.0
  %70 = vmatpush1.msra.mxu0 0.0
  %71 = vmatprep.subr.mxu0 0.0
  %72 = vmatpush1.msra.mxu0 0.0
  %73 = vmatprep.subr.mxu0 0.0
  %74 = vmatpush1.msra.mxu0 0.0
  %75 = vmatprep.subr.mxu0 0.0
  %76 = vmatpush1.msra.mxu0 0.0
  %77 = vmatprep.subr.mxu0 0.0
  %78 = vmatpush1.msra.mxu0 0.0
  %79 = vmatprep.subr.mxu0 0.0
  %80 = vmatpush1.msra.mxu0 0.0
  %81 = vmatprep.subr.mxu0 0.0
  %82 = vmatpush1.msra.mxu0 0.0
  %83 = vmatprep.subr.mxu0 0.0
  %84 = vmatpush1.msra.mxu0 0.0
  %85 = vmatprep.subr.mxu0 0.0
  %86 = vmatpush1.msra.mxu0 0.0
  %87 = vmatprep.subr.mxu0 0.0
  %88 = vmatpush1.msra.mxu0 0.0
  %89 = vmatprep.subr.mxu0 0.0
  %90 = vmatpush1.msra.mxu0 0.0
  %91 = vmatprep.subr.mxu0 0.0
  %92 = vmatpush1.msra.mxu0 0.0
  %93 = vmatprep.subr.mxu0 0.0
  %94 = vmatpush1.msra.mxu0 0.0
  %95 = vmatprep.subr.mxu0 0.0
  %96 = vmatpush1.msra.mxu0 0.0
  %97 = vmatprep.subr.mxu0 0.0
  %98 = vmatpush1.msra.mxu0 0.0
  %99 = vmatprep.subr.mxu0 0.0
  %100 = vmatpush1.msra.mxu0 0.0
  %101 = vmatprep.subr.mxu0 0.0
  %102 = vmatpush1.msra.mxu0 0.0
  %103 = vmatprep.subr.mxu0 0.0
  %104 = vmatpush1.msra.mxu0 0.0
  %105 = vmatprep.subr.mxu0 0.0
  %106 = vmatpush1.msra.mxu0 0.0
  %107 = vmatprep.subr.mxu0 0.0
  %108 = vmatpush1.msra.mxu0 0.0
  %109 = vmatprep.subr.mxu0 0.0
  %110 = vmatpush1.msra.mxu0 0.0
  %111 = vmatprep.subr.mxu0 0.0
  %112 = vmatpush1.msra.mxu0 0.0
  %113 = vmatprep.subr.mxu0 0.0
  %114 = vmatpush1.msra.mxu0 0.0
  %115 = vmatprep.subr.mxu0 0.0
  %116 = vmatpush1.msra.mxu0 0.0
  %117 = vmatprep.subr.mxu0 0.0
  %118 = vmatpush1.msra.mxu0 0.0
  %119 = vmatprep.subr.mxu0 0.0
  %120 = vmatpush1.msra.mxu0 0.0
  %121 = vmatprep.subr.mxu0 0.0
  %122 = vmatpush1.msra.mxu0 0.0
  %123 = vmatprep.mubr.f32.mxu0 0.0
  %124 = vmatmul.mubr.f32.gmra.mrb[0].mxu0 %v32
  %v125 = vpop.f32.mrb[0].mxu0
  %v126 = vadd.f32 %v28, %v125
  %v127 = vpop.f32.mrb[0].mxu0
  %128 = vmatprep.mubr.f32.mxu0 0.0
  %129 = vmatmul.mubr.f32.gmra.mrb[0].mxu0 %v35
  %v130 = vpop.f32.mrb[0].mxu0
  %v131 = vadd.f32 %v28, %v130
  %v132 = vpop.f32.mrb[0].mxu0
  %133 = vmatprep.mubr.f32.mxu0 0.0
  %134 = vmatmul.mubr.f32.gmra.mrb[0].mxu0 %v38
  %v135 = vpop.f32.mrb[0].mxu0
  %v136 = vadd.f32 %v28, %v135
  %v137 = vpop.f32.mrb[0].mxu0
  %138 = vmatprep.mubr.f32.mxu0 0.0
  %139 = vmatmul.mubr.f32.gmra.mrb[0].mxu0 %v41
  %v140 = vpop.f32.mrb[0].mxu0
  %v141 = vadd.f32 %v28, %v140
  %v142 = vpop.f32.mrb[0].mxu0
  %143 = vmatprep.mubr.f32.mxu0 0.0
  %144 = vmatmul.mubr.f32.gmra.mrb[0].mxu0 %v44
  %v145 = vpop.f32.mrb[0].mxu0
  %v146 = vadd.f32 %v28, %v145
  %v147 = vpop.f32.mrb[0].mxu0
  %148 = vmatprep.mubr.f32.mxu0 0.0
  %149 = vmatmul.mubr.f32.gmra.mrb[0].mxu0 %v47
  %v150 = vpop.f32.mrb[0].mxu0
  %v151 = vadd.f32 %v28, %v150
  %v152 = vpop.f32.mrb[0].mxu0
  %153 = vmatprep.mubr.f32.mxu0 0.0
  %154 = vmatmul.mubr.f32.gmra.mrb[0].mxu0 %v50
  %v155 = vpop.f32.mrb[0].mxu0
  %v156 = vadd.f32 %v28, %v155
  %v157 = vpop.f32.mrb[0].mxu0
  %158 = vmatprep.mubr.f32.mxu0 0.0
  %159 = vmatmul.mubr.f32.gmra.mrb[0].mxu0 %v53
  %v160 = vpop.f32.mrb[0].mxu0
  %v161 = vadd.f32 %v28, %v160
  %v162 = vpop.f32.mrb[0].mxu0
  %163 = vdwg.mxu0
  %164 = vst [vmem:[%s3] sm:$0xff] %v126
  %165 = vst [vmem:[%s3 + $0x8] sm:$0xff] %v131
  %166 = vst [vmem:[%s3 + $0x10] sm:$0xff] %v136
  %167 = vst [vmem:[%s3 + $0x18] sm:$0xff] %v141
  %168 = vst [vmem:[%s3 + $0x20] sm:$0xff] %v146
  %169 = vst [vmem:[%s3 + $0x28] sm:$0xff] %v151
  %170 = vst [vmem:[%s3 + $0x30] sm:$0xff] %v156
  %171 = vst [vmem:[%s3 + $0x38] sm:$0xff] %v161
  // Predicated region
  $region14: #{lstm_forward.3} parent=0 // pred_check
    _
  $region15: #{lstm_forward.3} parent=0 // pred_check_branch
    %173 = sbr.rel (0) target = $region17
  $region16: #{lstm_forward.3} parent=0 // pred_region
    _
  $region17: #{lstm_forward.3} parent=0 // pred_fallthru
    _
  // Predicated region
  $region18: #{lstm_forward.3} parent=0 // pred_check
    _
  $region19: #{lstm_forward.3} parent=0 // pred_check_branch
    %175 = sbr.rel (0) target = $region21
  $region20: #{lstm_forward.3} parent=0 // pred_region
    _
  $region21: #{lstm_forward.3} parent=0 // pred_fallthru
    _

// kernel: lstm_forward.5
$region0: #{lstm_forward.5}
  #allocation0 [shape = 'u32[]', space=smem, size = 0x4, offset = 0x4, fixed_abs, tag = 'smem constant byte address 0x4 - core index']
  #allocation1 [shape = 'u32[144,128]{1,0:T(1,128)}', space=vmem, size = 0x12000, scoped, tag = 'internal scratch']
  %s0 = inlined_call_operand.vmem [shape: f32[64,32], index: 0, kind: input, shape index: {}]
  %s1 = inlined_call_operand.vmem [shape: f32[32,4], index: 1, kind: input, shape index: {}]
  %s2 = inlined_call_operand.vmem [shape: f32[1,4], index: 2, kind: input, shape index: {}]
  %s3 = inlined_call_operand.vmem [shape: f32[64,4], index: 3, kind: output, shape index: {}]
  %s4 = sld [smem:[#allocation0]]
  $region22: #{lstm_forward.5} parent=0
    _
  %s6 = ssub.s32 1, %s4
  %s7 = scalar_select 0, %s6, %s4
  // Predicated region
  $region2: #{lstm_forward.5} parent=0 // pred_check
    _
  $region3: #{lstm_forward.5} parent=0 // pred_check_branch
    %9 = sbr.rel (0) target = $region5
  $region4: #{lstm_forward.5} parent=0 // pred_region
    _
  $region5: #{lstm_forward.5} parent=0 // pred_fallthru
    _
  // Predicated region
  $region6: #{lstm_forward.5} parent=0 // pred_check
    _
  $region7: #{lstm_forward.5} parent=0 // pred_check_branch
    %11 = sbr.rel (0) target = $region9
  $region8: #{lstm_forward.5} parent=0 // pred_region
    _
  $region9: #{lstm_forward.5} parent=0 // pred_fallthru
    _
  // Predicated region
  $region10: #{lstm_forward.5} parent=0 // pred_check
    _
  $region11: #{lstm_forward.5} parent=0 // pred_check_branch
    %13 = sbr.rel (0) target = $region13
  $region12: #{lstm_forward.5} parent=0 // pred_region
    _
  $region13: #{lstm_forward.5} parent=0 // pred_fallthru
    _
  %v14 = vld [vmem:[%s0] sm:$0xff]
  %v15 = vld [vmem:[%s0 + $0x8] sm:$0xff]
  %v16 = vld [vmem:[%s0 + $0x10] sm:$0xff]
  %v17 = vld [vmem:[%s0 + $0x18] sm:$0xff]
  %v18 = vld [vmem:[%s0 + $0x20] sm:$0xff]
  %v19 = vld [vmem:[%s0 + $0x28] sm:$0xff]
  %v20 = vld [vmem:[%s0 + $0x30] sm:$0xff]
  %v21 = vld [vmem:[%s0 + $0x38] sm:$0xff]
  %v22 = vld [vmem:[%s1] sm:$0xff]
  %v23 = vld [vmem:[%s1 + $0x8] sm:$0xff]
  %v24 = vld [vmem:[%s1 + $0x10] sm:$0xff]
  %v25 = vld [vmem:[%s1 + $0x18] sm:$0xff]
  %v26 = vld [vmem:[%s2] sm:$0x1]
  %v28 = vlaneseq
  %v29 = vshrl.u32 %v28, 7
  %v30 = vsub.s32 0, %v29
  %v31 = vrot.slane %v26, %v30
  %vm33 = vcmask 261120
  %v35 = vsel %vm33, %v14, 0
  %v38 = vsel %vm33, %v15, 0
  %v41 = vsel %vm33, %v16, 0
  %v44 = vsel %vm33, %v17, 0
  %v47 = vsel %vm33, %v18, 0
  %v50 = vsel %vm33, %v19, 0
  %v53 = vsel %vm33, %v20, 0
  %v56 = vsel %vm33, %v21, 0
  %58 = vmatprep.subr.mxu0 0.0
  %59 = vmatpush1.msra.mxu0 %v22
  %60 = vmatprep.subr.mxu0 0.0
  %61 = vmatpush1.msra.mxu0 %v23
  %62 = vmatprep.subr.mxu0 0.0
  %63 = vmatpush1.msra.mxu0 %v24
  %64 = vmatprep.subr.mxu0 0.0
  %65 = vmatpush1.msra.mxu0 %v25
  %66 = vmatprep.subr.mxu0 0.0
  %67 = vmatpush1.msra.mxu0 0.0
  %68 = vmatprep.subr.mxu0 0.0
  %69 = vmatpush1.msra.mxu0 0.0
  %70 = vmatprep.subr.mxu0 0.0
  %71 = vmatpush1.msra.mxu0 0.0
  %72 = vmatprep.subr.mxu0 0.0
  %73 = vmatpush1.msra.mxu0 0.0
  %74 = vmatprep.subr.mxu0 0.0
  %75 = vmatpush1.msra.mxu0 0.0
  %76 = vmatprep.subr.mxu0 0.0
  %77 = vmatpush1.msra.mxu0 0.0
  %78 = vmatprep.subr.mxu0 0.0
  %79 = vmatpush1.msra.mxu0 0.0
  %80 = vmatprep.subr.mxu0 0.0
  %81 = vmatpush1.msra.mxu0 0.0
  %82 = vmatprep.subr.mxu0 0.0
  %83 = vmatpush1.msra.mxu0 0.0
  %84 = vmatprep.subr.mxu0 0.0
  %85 = vmatpush1.msra.mxu0 0.0
  %86 = vmatprep.subr.mxu0 0.0
  %87 = vmatpush1.msra.mxu0 0.0
  %88 = vmatprep.subr.mxu0 0.0
  %89 = vmatpush1.msra.mxu0 0.0
  %90 = vmatprep.subr.mxu0 0.0
  %91 = vmatpush1.msra.mxu0 0.0
  %92 = vmatprep.subr.mxu0 0.0
  %93 = vmatpush1.msra.mxu0 0.0
  %94 = vmatprep.subr.mxu0 0.0
  %95 = vmatpush1.msra.mxu0 0.0
  %96 = vmatprep.subr.mxu0 0.0
  %97 = vmatpush1.msra.mxu0 0.0
  %98 = vmatprep.subr.mxu0 0.0
  %99 = vmatpush1.msra.mxu0 0.0
  %100 = vmatprep.subr.mxu0 0.0
  %101 = vmatpush1.msra.mxu0 0.0
  %102 = vmatprep.subr.mxu0 0.0
  %103 = vmatpush1.msra.mxu0 0.0
  %104 = vmatprep.subr.mxu0 0.0
  %105 = vmatpush1.msra.mxu0 0.0
  %106 = vmatprep.subr.mxu0 0.0
  %107 = vmatpush1.msra.mxu0 0.0
  %108 = vmatprep.subr.mxu0 0.0
  %109 = vmatpush1.msra.mxu0 0.0
  %110 = vmatprep.subr.mxu0 0.0
  %111 = vmatpush1.msra.mxu0 0.0
  %112 = vmatprep.subr.mxu0 0.0
  %113 = vmatpush1.msra.mxu0 0.0
  %114 = vmatprep.subr.mxu0 0.0
  %115 = vmatpush1.msra.mxu0 0.0
  %116 = vmatprep.subr.mxu0 0.0
  %117 = vmatpush1.msra.mxu0 0.0
  %118 = vmatprep.subr.mxu0 0.0
  %119 = vmatpush1.msra.mxu0 0.0
  %120 = vmatprep.subr.mxu0 0.0
  %121 = vmatpush1.msra.mxu0 0.0
  %122 = vmatprep.mubr.f32.mxu0 0.0
  %123 = vmatmul.mubr.f32.gmra.mrb[0].mxu0 %v35
  %v124 = vpop.f32.mrb[0].mxu0
  %v125 = vadd.f32 %v31, %v124
  %v126 = vpop.f32.mrb[0].mxu0
  %127 = vmatprep.mubr.f32.mxu0 0.0
  %128 = vmatmul.mubr.f32.gmra.mrb[0].mxu0 %v38
  %v129 = vpop.f32.mrb[0].mxu0
  %v130 = vadd.f32 %v31, %v129
  %v131 = vpop.f32.mrb[0].mxu0
  %132 = vmatprep.mubr.f32.mxu0 0.0
  %133 = vmatmul.mubr.f32.gmra.mrb[0].mxu0 %v41
  %v134 = vpop.f32.mrb[0].mxu0
  %v135 = vadd.f32 %v31, %v134
  %v136 = vpop.f32.mrb[0].mxu0
  %137 = vmatprep.mubr.f32.mxu0 0.0
  %138 = vmatmul.mubr.f32.gmra.mrb[0].mxu0 %v44
  %v139 = vpop.f32.mrb[0].mxu0
  %v140 = vadd.f32 %v31, %v139
  %v141 = vpop.f32.mrb[0].mxu0
  %142 = vmatprep.mubr.f32.mxu0 0.0
  %143 = vmatmul.mubr.f32.gmra.mrb[0].mxu0 %v47
  %v144 = vpop.f32.mrb[0].mxu0
  %v145 = vadd.f32 %v31, %v144
  %v146 = vpop.f32.mrb[0].mxu0
  %147 = vmatprep.mubr.f32.mxu0 0.0
  %148 = vmatmul.mubr.f32.gmra.mrb[0].mxu0 %v50
  %v149 = vpop.f32.mrb[0].mxu0
  %v150 = vadd.f32 %v31, %v149
  %v151 = vpop.f32.mrb[0].mxu0
  %152 = vmatprep.mubr.f32.mxu0 0.0
  %153 = vmatmul.mubr.f32.gmra.mrb[0].mxu0 %v53
  %v154 = vpop.f32.mrb[0].mxu0
  %v155 = vadd.f32 %v31, %v154
  %v156 = vpop.f32.mrb[0].mxu0
  %157 = vmatprep.mubr.f32.mxu0 0.0
  %158 = vmatmul.mubr.f32.gmra.mrb[0].mxu0 %v56
  %v159 = vpop.f32.mrb[0].mxu0
  %v160 = vadd.f32 %v31, %v159
  %v161 = vpop.f32.mrb[0].mxu0
  %162 = vdwg.mxu0
  %vm163 = vcmask 31744
  %v164 = vsel %vm163, %v125, -inf
  %165 = vmax.xlane.f32.xlu0 %v164
  %v166 = vpop.xlane.xlu0 %165
  %v167 = vsel %vm163, %v130, -inf
  %168 = vmax.xlane.f32.xlu0 %v167
  %v169 = vpop.xlane.xlu0 %168
  %v170 = vsel %vm163, %v135, -inf
  %171 = vmax.xlane.f32.xlu0 %v170
  %v172 = vpop.xlane.xlu0 %171
  %v173 = vsel %vm163, %v140, -inf
  %174 = vmax.xlane.f32.xlu0 %v173
  %v175 = vpop.xlane.xlu0 %174
  %v176 = vsel %vm163, %v145, -inf
  %177 = vmax.xlane.f32.xlu0 %v176
  %v178 = vpop.xlane.xlu0 %177
  %v179 = vsel %vm163, %v150, -inf
  %180 = vmax.xlane.f32.xlu0 %v179
  %v181 = vpop.xlane.xlu0 %180
  %v182 = vsel %vm163, %v155, -inf
  %183 = vmax.xlane.f32.xlu0 %v182
  %v184 = vpop.xlane.xlu0 %183
  %v185 = vsel %vm163, %v160, -inf
  %186 = vmax.xlane.f32.xlu0 %v185
  %v187 = vpop.xlane.xlu0 %186
  %v188 = vsub.f32 %v125, %v166
  %v189 = vsub.f32 %v130, %v169
  %v190 = vsub.f32 %v135, %v172
  %v191 = vsub.f32 %v140, %v175
  %v192 = vsub.f32 %v145, %v178
  %v193 = vsub.f32 %v150, %v181
  %v194 = vsub.f32 %v155, %v184
  %v195 = vsub.f32 %v160, %v187
  %v196 = vmul.f32 %v188, 1.442695
  %v197 = vpow.pop %v196
  %v198 = vmul.f32 %v189, 1.442695
  %v199 = vpow.pop %v198
  %v200 = vmul.f32 %v190, 1.442695
  %v201 = vpow.pop %v200
  %v202 = vmul.f32 %v191, 1.442695
  %v203 = vpow.pop %v202
  %v204 = vmul.f32 %v192, 1.442695
  %v205 = vpow.pop %v204
  %v206 = vmul.f32 %v193, 1.442695
  %v207 = vpow.pop %v206
  %v208 = vmul.f32 %v194, 1.442695
  %v209 = vpow.pop %v208
  %v210 = vmul.f32 %v195, 1.442695
  %v211 = vpow.pop %v210
  %v212 = vsel %vm163, %v197, 0.0
  %213 = vadd.xlane.f32.xlu0 %v212
  %v214 = vpop.xlane.xlu0 %213
  %v215 = vsel %vm163, %v199, 0.0
  %216 = vadd.xlane.f32.xlu0 %v215
  %v217 = vpop.xlane.xlu0 %216
  %v218 = vsel %vm163, %v201, 0.0
  %219 = vadd.xlane.f32.xlu0 %v218
  %v220 = vpop.xlane.xlu0 %219
  %v221 = vsel %vm163, %v203, 0.0
  %222 = vadd.xlane.f32.xlu0 %v221
  %v223 = vpop.xlane.xlu0 %222
  %v224 = vsel %vm163, %v205, 0.0
  %225 = vadd.xlane.f32.xlu0 %v224
  %v226 = vpop.xlane.xlu0 %225
  %v227 = vsel %vm163, %v207, 0.0
  %228 = vadd.xlane.f32.xlu0 %v227
  %v229 = vpop.xlane.xlu0 %228
  %v230 = vsel %vm163, %v209, 0.0
  %231 = vadd.xlane.f32.xlu0 %v230
  %v232 = vpop.xlane.xlu0 %231
  %v233 = vsel %vm163, %v211, 0.0
  %234 = vadd.xlane.f32.xlu0 %v233
  %v235 = vpop.xlane.xlu0 %234
  %v236 = vrcp.pop %v214
  %v237 = vrcp.pop %v217
  %v238 = vrcp.pop %v220
  %v239 = vrcp.pop %v223
  %v240 = vrcp.pop %v226
  %v241 = vrcp.pop %v229
  %v242 = vrcp.pop %v232
  %v243 = vrcp.pop %v235
  %v244 = vmul.f32 %v197, %v236
  %v245 = vmul.f32 %v199, %v237
  %v246 = vmul.f32 %v201, %v238
  %v247 = vmul.f32 %v203, %v239
  %v248 = vmul.f32 %v205, %v240
  %v249 = vmul.f32 %v207, %v241
  %v250 = vmul.f32 %v209, %v242
  %v251 = vmul.f32 %v211, %v243
  %252 = vst.msk [vmem:[%s3] sm:$0xff] %vm163, %v244
  %253 = vst.msk [vmem:[%s3 + $0x8] sm:$0xff] %vm163, %v245
  %254 = vst.msk [vmem:[%s3 + $0x10] sm:$0xff] %vm163, %v246
  %255 = vst.msk [vmem:[%s3 + $0x18] sm:$0xff] %vm163, %v247
  %256 = vst.msk [vmem:[%s3 + $0x20] sm:$0xff] %vm163, %v248
  %257 = vst.msk [vmem:[%s3 + $0x28] sm:$0xff] %vm163, %v249
  %258 = vst.msk [vmem:[%s3 + $0x30] sm:$0xff] %vm163, %v250
  %259 = vst.msk [vmem:[%s3 + $0x38] sm:$0xff] %vm163, %v251
  // Predicated region
  $region14: #{lstm_forward.5} parent=0 // pred_check
    _
  $region15: #{lstm_forward.5} parent=0 // pred_check_branch
    %261 = sbr.rel (0) target = $region17
  $region16: #{lstm_forward.5} parent=0 // pred_region
    _
  $region17: #{lstm_forward.5} parent=0 // pred_fallthru
    _
  // Predicated region
  $region18: #{lstm_forward.5} parent=0 // pred_check
    _
  $region19: #{lstm_forward.5} parent=0 // pred_check_branch
    %263 = sbr.rel (0) target = $region21
  $region20: #{lstm_forward.5} parent=0 // pred_region
    _
  $region21: #{lstm_forward.5} parent=0 // pred_fallthru
    _

// kernel: lstm_forward.4
$region0: #{lstm_forward.4}
  #allocation0 [shape = 'u32[]', space=smem, size = 0x4, offset = 0x4, fixed_abs, tag = 'smem constant byte address 0x4 - core index']
  #allocation1 [shape = 'u32[144,128]{1,0:T(1,128)}', space=vmem, size = 0x12000, scoped, tag = 'internal scratch']
  #allocation2 [shape = 'f32[8,32]{1,0:T(8,128)}', space=vmem, size = 0x1000, scoped, tag = 'scratch operand']
  %s0 = inlined_call_operand.vmem [shape: f32[8,8,128], index: 0, kind: input, shape index: {}]
  %s1 = inlined_call_operand.vmem [shape: f32[32,128], index: 1, kind: input, shape index: {}]
  %s2 = inlined_call_operand.vmem [shape: f32[1,32], index: 2, kind: input, shape index: {}]
  %s3 = inlined_call_operand.vmem [shape: f32[8,8,32], index: 3, kind: output, shape index: {}]
  %s4 = sld [smem:[#allocation0]]
  $region26: #{lstm_forward.4} parent=0
    _
  %s6 = ssub.s32 1, %s4
  %s7 = scalar_select 0, %s6, %s4
  // Predicated region
  $region2: #{lstm_forward.4} parent=0 // pred_check
    _
  $region3: #{lstm_forward.4} parent=0 // pred_check_branch
    %9 = sbr.rel (0) target = $region5
  $region4: #{lstm_forward.4} parent=0 // pred_region
    _
  $region5: #{lstm_forward.4} parent=0 // pred_fallthru
    _
  // Predicated region
  $region6: #{lstm_forward.4} parent=0 // pred_check
    _
  $region7: #{lstm_forward.4} parent=0 // pred_check_branch
    %11 = sbr.rel (0) target = $region9
  $region8: #{lstm_forward.4} parent=0 // pred_region
    _
  $region9: #{lstm_forward.4} parent=0 // pred_fallthru
    _
  // Predicated region
  $region10: #{lstm_forward.4} parent=0 // pred_check
    _
  $region11: #{lstm_forward.4} parent=0 // pred_check_branch
    %13 = sbr.rel (0) target = $region13
  $region12: #{lstm_forward.4} parent=0 // pred_region
    _
  $region13: #{lstm_forward.4} parent=0 // pred_fallthru
    _
  %p14 = scmp.eq.s32.totalorder 0, 0
  // Predicated region
  $region14: #{lstm_forward.4} parent=0 // pred_check
    %p15 = pneg %p14
  $region15: #{lstm_forward.4} parent=0 // pred_check_branch
    %17 = sbr.rel (%p15) target = $region17
  $region16: #{lstm_forward.4} parent=0 // pred_region
    %v18 = vld [vmem:[%s2] sm:$0x1]
    %v20 = vlaneseq
    %v21 = vshrl.u32 %v20, 7
    %v22 = vsub.s32 0, %v21
    %v23 = vrot.slane %v18, %v22
    %vm25 = vcmask 261120
    %26 = vst.msk [vmem:[#allocation2] sm:$0xff] %vm25, %v23
  $region17: #{lstm_forward.4} parent=0 // pred_fallthru
    _
  %v27 = vld [vmem:[%s1] sm:$0xff]
  %v28 = vld [vmem:[%s1 + $0x8] sm:$0xff]
  %v29 = vld [vmem:[%s1 + $0x10] sm:$0xff]
  %v30 = vld [vmem:[%s1 + $0x18] sm:$0xff]
  %v31 = vld [vmem:[#allocation2] sm:$0xff]
  %v32 = vld [vmem:[%s0] sm:$0xff]
  %vm33 = vcmask 261120
  %v35 = vsel %vm33, %v31, 0
  %37 = vmatprep.subr.mxu0 0.0
  %38 = vmatpush1.msra.mxu0 %v27
  %39 = vmatprep.subr.mxu0 0.0
  %40 = vmatpush1.msra.mxu0 %v28
  %41 = vmatprep.subr.mxu0 0.0
  %42 = vmatpush1.msra.mxu0 %v29
  %43 = vmatprep.subr.mxu0 0.0
  %44 = vmatpush1.msra.mxu0 %v30
  %45 = vmatprep.subr.mxu0 0.0
  %46 = vmatpush1.msra.mxu0 0.0
  %47 = vmatprep.subr.mxu0 0.0
  %48 = vmatpush1.msra.mxu0 0.0
  %49 = vmatprep.subr.mxu0 0.0
  %50 = vmatpush1.msra.mxu0 0.0
  %51 = vmatprep.subr.mxu0 0.0
  %52 = vmatpush1.msra.mxu0 0.0
  %53 = vmatprep.subr.mxu0 0.0
  %54 = vmatpush1.msra.mxu0 0.0
  %55 = vmatprep.subr.mxu0 0.0
  %56 = vmatpush1.msra.mxu0 0.0
  %57 = vmatprep.subr.mxu0 0.0
  %58 = vmatpush1.msra.mxu0 0.0
  %59 = vmatprep.subr.mxu0 0.0
  %60 = vmatpush1.msra.mxu0 0.0
  %61 = vmatprep.subr.mxu0 0.0
  %62 = vmatpush1.msra.mxu0 0.0
  %63 = vmatprep.subr.mxu0 0.0
  %64 = vmatpush1.msra.mxu0 0.0
  %65 = vmatprep.subr.mxu0 0.0
  %66 = vmatpush1.msra.mxu0 0.0
  %67 = vmatprep.subr.mxu0 0.0
  %68 = vmatpush1.msra.mxu0 0.0
  %69 = vmatprep.subr.mxu0 0.0
  %70 = vmatpush1.msra.mxu0 0.0
  %71 = vmatprep.subr.mxu0 0.0
  %72 = vmatpush1.msra.mxu0 0.0
  %73 = vmatprep.subr.mxu0 0.0
  %74 = vmatpush1.msra.mxu0 0.0
  %75 = vmatprep.subr.mxu0 0.0
  %76 = vmatpush1.msra.mxu0 0.0
  %77 = vmatprep.subr.mxu0 0.0
  %78 = vmatpush1.msra.mxu0 0.0
  %79 = vmatprep.subr.mxu0 0.0
  %80 = vmatpush1.msra.mxu0 0.0
  %81 = vmatprep.subr.mxu0 0.0
  %82 = vmatpush1.msra.mxu0 0.0
  %83 = vmatprep.subr.mxu0 0.0
  %84 = vmatpush1.msra.mxu0 0.0
  %85 = vmatprep.subr.mxu0 0.0
  %86 = vmatpush1.msra.mxu0 0.0
  %87 = vmatprep.subr.mxu0 0.0
  %88 = vmatpush1.msra.mxu0 0.0
  %89 = vmatprep.subr.mxu0 0.0
  %90 = vmatpush1.msra.mxu0 0.0
  %91 = vmatprep.subr.mxu0 0.0
  %92 = vmatpush1.msra.mxu0 0.0
  %93 = vmatprep.subr.mxu0 0.0
  %94 = vmatpush1.msra.mxu0 0.0
  %95 = vmatprep.subr.mxu0 0.0
  %96 = vmatpush1.msra.mxu0 0.0
  %97 = vmatprep.subr.mxu0 0.0
  %98 = vmatpush1.msra.mxu0 0.0
  %99 = vmatprep.subr.mxu0 0.0
  %100 = vmatpush1.msra.mxu0 0.0
  %101 = vmatprep.mubr.f32.mxu0 0.0
  %102 = vmatmul.mubr.f32.gmra.mrb[0].mxu0 %v35
  %v103 = vpop.f32.mrb[0].mxu0
  %v104 = vadd.f32 0.0, %v103
  %v105 = vpop.f32.mrb[0].mxu0
  %106 = vdwg.mxu0
  %v107 = vadd.f32 %v32, %v104
  %v108 = vxor.u32 %v107, 2147483648
  %v109 = vmul.f32 %v108, 1.442695
  %v110 = vpow.pop %v109
  %v111 = vadd.f32 %v110, 1.0
  %v112 = vrcp.pop %v111
  %v113 = vmul.f32 1.0, %v112
  %v114 = vtanh.pop %v107
  %v115 = vmul.f32 %v113, %v31
  %117 = vrot.lane.b32.xlu0 %v114, 64
  %v118 = vpop.permute.xlu0 %117
  %v120 = vmul.f32 %v113, %v118
  %122 = vrot.lane.b32.xlu0 %v120, 96
  %v123 = vpop.permute.xlu0 %122
  %v125 = vadd.f32 %v115, %v123
  %v126 = vtanh.pop %v125
  %128 = vrot.lane.b32.xlu0 %v126, 64
  %v129 = vpop.permute.xlu0 %128
  %v131 = vmul.f32 %v113, %v129
  %133 = vrot.lane.b32.xlu0 %v131, 64
  %v134 = vpop.permute.xlu0 %133
  %136 = vst.msk [vmem:[%s3] sm:$0xff] %vm33, %v134
  %s137 = scalar_lea.vmem %s0, 8
  %v138 = vld [vmem:[%s137] sm:$0xff]
  %v139 = vsel %vm33, %v134, 0
  %141 = vmatprep.subr.mxu0 0.0
  %142 = vmatpush1.msra.mxu0 %v27
  %143 = vmatprep.subr.mxu0 0.0
  %144 = vmatpush1.msra.mxu0 %v28
  %145 = vmatprep.subr.mxu0 0.0
  %146 = vmatpush1.msra.mxu0 %v29
  %147 = vmatprep.subr.mxu0 0.0
  %148 = vmatpush1.msra.mxu0 %v30
  %149 = vmatprep.subr.mxu0 0.0
  %150 = vmatpush1.msra.mxu0 0.0
  %151 = vmatprep.subr.mxu0 0.0
  %152 = vmatpush1.msra.mxu0 0.0
  %153 = vmatprep.subr.mxu0 0.0
  %154 = vmatpush1.msra.mxu0 0.0
  %155 = vmatprep.subr.mxu0 0.0
  %156 = vmatpush1.msra.mxu0 0.0
  %157 = vmatprep.subr.mxu0 0.0
  %158 = vmatpush1.msra.mxu0 0.0
  %159 = vmatprep.subr.mxu0 0.0
  %160 = vmatpush1.msra.mxu0 0.0
  %161 = vmatprep.subr.mxu0 0.0
  %162 = vmatpush1.msra.mxu0 0.0
  %163 = vmatprep.subr.mxu0 0.0
  %164 = vmatpush1.msra.mxu0 0.0
  %165 = vmatprep.subr.mxu0 0.0
  %166 = vmatpush1.msra.mxu0 0.0
  %167 = vmatprep.subr.mxu0 0.0
  %168 = vmatpush1.msra.mxu0 0.0
  %169 = vmatprep.subr.mxu0 0.0
  %170 = vmatpush1.msra.mxu0 0.0
  %171 = vmatprep.subr.mxu0 0.0
  %172 = vmatpush1.msra.mxu0 0.0
  %173 = vmatprep.subr.mxu0 0.0
  %174 = vmatpush1.msra.mxu0 0.0
  %175 = vmatprep.subr.mxu0 0.0
  %176 = vmatpush1.msra.mxu0 0.0
  %177 = vmatprep.subr.mxu0 0.0
  %178 = vmatpush1.msra.mxu0 0.0
  %179 = vmatprep.subr.mxu0 0.0
  %180 = vmatpush1.msra.mxu0 0.0
  %181 = vmatprep.subr.mxu0 0.0
  %182 = vmatpush1.msra.mxu0 0.0
  %183 = vmatprep.subr.mxu0 0.0
  %184 = vmatpush1.msra.mxu0 0.0
  %185 = vmatprep.subr.mxu0 0.0
  %186 = vmatpush1.msra.mxu0 0.0
  %187 = vmatprep.subr.mxu0 0.0
  %188 = vmatpush1.msra.mxu0 0.0
  %189 = vmatprep.subr.mxu0 0.0
  %190 = vmatpush1.msra.mxu0 0.0
  %191 = vmatprep.subr.mxu0 0.0
  %192 = vmatpush1.msra.mxu0 0.0
  %193 = vmatprep.subr.mxu0 0.0
  %194 = vmatpush1.msra.mxu0 0.0
  %195 = vmatprep.subr.mxu0 0.0
  %196 = vmatpush1.msra.mxu0 0.0
  %197 = vmatprep.subr.mxu0 0.0
  %198 = vmatpush1.msra.mxu0 0.0
  %199 = vmatprep.subr.mxu0 0.0
  %200 = vmatpush1.msra.mxu0 0.0
  %201 = vmatprep.subr.mxu0 0.0
  %202 = vmatpush1.msra.mxu0 0.0
  %203 = vmatprep.subr.mxu0 0.0
  %204 = vmatpush1.msra.mxu0 0.0
  %205 = vmatprep.mubr.f32.mxu0 0.0
  %206 = vmatmul.mubr.f32.gmra.mrb[0].mxu0 %v139
  %v207 = vpop.f32.mrb[0].mxu0
  %v208 = vadd.f32 0.0, %v207
  %v209 = vpop.f32.mrb[0].mxu0
  %210 = vdwg.mxu0
  %v211 = vadd.f32 %v138, %v208
  %v212 = vxor.u32 %v211, 2147483648
  %v213 = vmul.f32 %v212, 1.442695
  %v214 = vpow.pop %v213
  %v215 = vadd.f32 %v214, 1.0
  %v216 = vrcp.pop %v215
  %v217 = vmul.f32 1.0, %v216
  %v218 = vtanh.pop %v211
  %v219 = vmul.f32 %v217, %v134
  %221 = vrot.lane.b32.xlu0 %v218, 64
  %v222 = vpop.permute.xlu0 %221
  %v224 = vmul.f32 %v217, %v222
  %226 = vrot.lane.b32.xlu0 %v224, 96
  %v227 = vpop.permute.xlu0 %226
  %v229 = vadd.f32 %v219, %v227
  %v230 = vtanh.pop %v229
  %232 = vrot.lane.b32.xlu0 %v230, 64
  %v233 = vpop.permute.xlu0 %232
  %v235 = vmul.f32 %v217, %v233
  %237 = vrot.lane.b32.xlu0 %v235, 64
  %v238 = vpop.permute.xlu0 %237
  %s240 = scalar_lea.vmem %s3, 8
  %241 = vst.msk [vmem:[%s240] sm:$0xff] %vm33, %v238
  %s242 = scalar_lea.vmem %s0, 16
  %v243 = vld [vmem:[%s242] sm:$0xff]
  %v244 = vsel %vm33, %v238, 0
  %246 = vmatprep.subr.mxu0 0.0
  %247 = vmatpush1.msra.mxu0 %v27
  %248 = vmatprep.subr.mxu0 0.0
  %249 = vmatpush1.msra.mxu0 %v28
  %250 = vmatprep.subr.mxu0 0.0
  %251 = vmatpush1.msra.mxu0 %v29
  %252 = vmatprep.subr.mxu0 0.0
  %253 = vmatpush1.msra.mxu0 %v30
  %254 = vmatprep.subr.mxu0 0.0
  %255 = vmatpush1.msra.mxu0 0.0
  %256 = vmatprep.subr.mxu0 0.0
  %257 = vmatpush1.msra.mxu0 0.0
  %258 = vmatprep.subr.mxu0 0.0
  %259 = vmatpush1.msra.mxu0 0.0
  %260 = vmatprep.subr.mxu0 0.0
  %261 = vmatpush1.msra.mxu0 0.0
  %262 = vmatprep.subr.mxu0 0.0
  %263 = vmatpush1.msra.mxu0 0.0
  %264 = vmatprep.subr.mxu0 0.0
  %265 = vmatpush1.msra.mxu0 0.0
  %266 = vmatprep.subr.mxu0 0.0
  %267 = vmatpush1.msra.mxu0 0.0
  %268 = vmatprep.subr.mxu0 0.0
  %269 = vmatpush1.msra.mxu0 0.0
  %270 = vmatprep.subr.mxu0 0.0
  %271 = vmatpush1.msra.mxu0 0.0
  %272 = vmatprep.subr.mxu0 0.0
  %273 = vmatpush1.msra.mxu0 0.0
  %274 = vmatprep.subr.mxu0 0.0
  %275 = vmatpush1.msra.mxu0 0.0
  %276 = vmatprep.subr.mxu0 0.0
  %277 = vmatpush1.msra.mxu0 0.0
  %278 = vmatprep.subr.mxu0 0.0
  %279 = vmatpush1.msra.mxu0 0.0
  %280 = vmatprep.subr.mxu0 0.0
  %281 = vmatpush1.msra.mxu0 0.0
  %282 = vmatprep.subr.mxu0 0.0
  %283 = vmatpush1.msra.mxu0 0.0
  %284 = vmatprep.subr.mxu0 0.0
  %285 = vmatpush1.msra.mxu0 0.0
  %286 = vmatprep.subr.mxu0 0.0
  %287 = vmatpush1.msra.mxu0 0.0
  %288 = vmatprep.subr.mxu0 0.0
  %289 = vmatpush1.msra.mxu0 0.0
  %290 = vmatprep.subr.mxu0 0.0
  %291 = vmatpush1.msra.mxu0 0.0
  %292 = vmatprep.subr.mxu0 0.0
  %293 = vmatpush1.msra.mxu0 0.0
  %294 = vmatprep.subr.mxu0 0.0
  %295 = vmatpush1.msra.mxu0 0.0
  %296 = vmatprep.subr.mxu0 0.0
  %297 = vmatpush1.msra.mxu0 0.0
  %298 = vmatprep.subr.mxu0 0.0
  %299 = vmatpush1.msra.mxu0 0.0
  %300 = vmatprep.subr.mxu0 0.0
  %301 = vmatpush1.msra.mxu0 0.0
  %302 = vmatprep.subr.mxu0 0.0
  %303 = vmatpush1.msra.mxu0 0.0
  %304 = vmatprep.subr.mxu0 0.0
  %305 = vmatpush1.msra.mxu0 0.0
  %306 = vmatprep.subr.mxu0 0.0
  %307 = vmatpush1.msra.mxu0 0.0
  %308 = vmatprep.subr.mxu0 0.0
  %309 = vmatpush1.msra.mxu0 0.0
  %310 = vmatprep.mubr.f32.mxu0 0.0
  %311 = vmatmul.mubr.f32.gmra.mrb[0].mxu0 %v244
  %v312 = vpop.f32.mrb[0].mxu0
  %v313 = vadd.f32 0.0, %v312
  %v314 = vpop.f32.mrb[0].mxu0
  %315 = vdwg.mxu0
  %v316 = vadd.f32 %v243, %v313
  %v317 = vxor.u32 %v316, 2147483648
  %v318 = vmul.f32 %v317, 1.442695
  %v319 = vpow.pop %v318
  %v320 = vadd.f32 %v319, 1.0
  %v321 = vrcp.pop %v320
  %v322 = vmul.f32 1.0, %v321
  %v323 = vtanh.pop %v316
  %v324 = vmul.f32 %v322, %v238
  %326 = vrot.lane.b32.xlu0 %v323, 64
  %v327 = vpop.permute.xlu0 %326
  %v329 = vmul.f32 %v322, %v327
  %331 = vrot.lane.b32.xlu0 %v329, 96
  %v332 = vpop.permute.xlu0 %331
  %v334 = vadd.f32 %v324, %v332
  %v335 = vtanh.pop %v334
  %337 = vrot.lane.b32.xlu0 %v335, 64
  %v338 = vpop.permute.xlu0 %337
  %v340 = vmul.f32 %v322, %v338
  %342 = vrot.lane.b32.xlu0 %v340, 64
  %v343 = vpop.permute.xlu0 %342
  %s345 = scalar_lea.vmem %s3, 16
  %346 = vst.msk [vmem:[%s345] sm:$0xff] %vm33, %v343
  %s347 = scalar_lea.vmem %s0, 24
  %v348 = vld [vmem:[%s347] sm:$0xff]
  %v349 = vsel %vm33, %v343, 0
  %351 = vmatprep.subr.mxu0 0.0
  %352 = vmatpush1.msra.mxu0 %v27
  %353 = vmatprep.subr.mxu0 0.0
  %354 = vmatpush1.msra.mxu0 %v28
  %355 = vmatprep.subr.mxu0 0.0
  %356 = vmatpush1.msra.mxu0 %v29
  %357 = vmatprep.subr.mxu0 0.0
  %358 = vmatpush1.msra.mxu0 %v30
  %359 = vmatprep.subr.mxu0 0.0
  %360 = vmatpush1.msra.mxu0 0.0
  %361 = vmatprep.subr.mxu0 0.0
  %362 = vmatpush1.msra.mxu0 0.0
  %363 = vmatprep.subr.mxu0 0.0
  %364 = vmatpush1.msra.mxu0 0.0
  %365 = vmatprep.subr.mxu0 0.0
  %366 = vmatpush1.msra.mxu0 0.0
  %367 = vmatprep.subr.mxu0 0.0
  %368 = vmatpush1.msra.mxu0 0.0
  %369 = vmatprep.subr.mxu0 0.0
  %370 = vmatpush1.msra.mxu0 0.0
  %371 = vmatprep.subr.mxu0 0.0
  %372 = vmatpush1.msra.mxu0 0.0
  %373 = vmatprep.subr.mxu0 0.0
  %374 = vmatpush1.msra.mxu0 0.0
  %375 = vmatprep.subr.mxu0 0.0
  %376 = vmatpush1.msra.mxu0 0.0
  %377 = vmatprep.subr.mxu0 0.0
  %378 = vmatpush1.msra.mxu0 0.0
  %379 = vmatprep.subr.mxu0 0.0
  %380 = vmatpush1.msra.mxu0 0.0
  %381 = vmatprep.subr.mxu0 0.0
  %382 = vmatpush1.msra.mxu0 0.0
  %383 = vmatprep.subr.mxu0 0.0
  %384 = vmatpush1.msra.mxu0 0.0
  %385 = vmatprep.subr.mxu0 0.0
  %386 = vmatpush1.msra.mxu0 0.0
  %387 = vmatprep.subr.mxu0 0.0
  %388 = vmatpush1.msra.mxu0 0.0
  %389 = vmatprep.subr.mxu0 0.0
  %390 = vmatpush1.msra.mxu0 0.0
  %391 = vmatprep.subr.mxu0 0.0
  %392 = vmatpush1.msra.mxu0 0.0
  %393 = vmatprep.subr.mxu0 0.0
  %394 = vmatpush1.msra.mxu0 0.0
  %395 = vmatprep.subr.mxu0 0.0
  %396 = vmatpush1.msra.mxu0 0.0
  %397 = vmatprep.subr.mxu0 0.0
  %398 = vmatpush1.msra.mxu0 0.0
  %399 = vmatprep.subr.mxu0 0.0
  %400 = vmatpush1.msra.mxu0 0.0
  %401 = vmatprep.subr.mxu0 0.0
  %402 = vmatpush1.msra.mxu0 0.0
  %403 = vmatprep.subr.mxu0 0.0
  %404 = vmatpush1.msra.mxu0 0.0
  %405 = vmatprep.subr.mxu0 0.0
  %406 = vmatpush1.msra.mxu0 0.0
  %407 = vmatprep.subr.mxu0 0.0
  %408 = vmatpush1.msra.mxu0 0.0
  %409 = vmatprep.subr.mxu0 0.0
  %410 = vmatpush1.msra.mxu0 0.0
  %411 = vmatprep.subr.mxu0 0.0
  %412 = vmatpush1.msra.mxu0 0.0
  %413 = vmatprep.subr.mxu0 0.0
  %414 = vmatpush1.msra.mxu0 0.0
  %415 = vmatprep.mubr.f32.mxu0 0.0
  %416 = vmatmul.mubr.f32.gmra.mrb[0].mxu0 %v349
  %v417 = vpop.f32.mrb[0].mxu0
  %v418 = vadd.f32 0.0, %v417
  %v419 = vpop.f32.mrb[0].mxu0
  %420 = vdwg.mxu0
  %v421 = vadd.f32 %v348, %v418
  %v422 = vxor.u32 %v421, 2147483648
  %v423 = vmul.f32 %v422, 1.442695
  %v424 = vpow.pop %v423
  %v425 = vadd.f32 %v424, 1.0
  %v426 = vrcp.pop %v425
  %v427 = vmul.f32 1.0, %v426
  %v428 = vtanh.pop %v421
  %v429 = vmul.f32 %v427, %v343
  %431 = vrot.lane.b32.xlu0 %v428, 64
  %v432 = vpop.permute.xlu0 %431
  %v434 = vmul.f32 %v427, %v432
  %436 = vrot.lane.b32.xlu0 %v434, 96
  %v437 = vpop.permute.xlu0 %436
  %v439 = vadd.f32 %v429, %v437
  %v440 = vtanh.pop %v439
  %442 = vrot.lane.b32.xlu0 %v440, 64
  %v443 = vpop.permute.xlu0 %442
  %v445 = vmul.f32 %v427, %v443
  %447 = vrot.lane.b32.xlu0 %v445, 64
  %v448 = vpop.permute.xlu0 %447
  %s450 = scalar_lea.vmem %s3, 24
  %451 = vst.msk [vmem:[%s450] sm:$0xff] %vm33, %v448
  %s452 = scalar_lea.vmem %s0, 32
  %v453 = vld [vmem:[%s452] sm:$0xff]
  %v454 = vsel %vm33, %v448, 0
  %456 = vmatprep.subr.mxu0 0.0
  %457 = vmatpush1.msra.mxu0 %v27
  %458 = vmatprep.subr.mxu0 0.0
  %459 = vmatpush1.msra.mxu0 %v28
  %460 = vmatprep.subr.mxu0 0.0
  %461 = vmatpush1.msra.mxu0 %v29
  %462 = vmatprep.subr.mxu0 0.0
  %463 = vmatpush1.msra.mxu0 %v30
  %464 = vmatprep.subr.mxu0 0.0
  %465 = vmatpush1.msra.mxu0 0.0
  %466 = vmatprep.subr.mxu0 0.0
  %467 = vmatpush1.msra.mxu0 0.0
  %468 = vmatprep.subr.mxu0 0.0
  %469 = vmatpush1.msra.mxu0 0.0
  %470 = vmatprep.subr.mxu0 0.0
  %471 = vmatpush1.msra.mxu0 0.0
  %472 = vmatprep.subr.mxu0 0.0
  %473 = vmatpush1.msra.mxu0 0.0
  %474 = vmatprep.subr.mxu0 0.0
  %475 = vmatpush1.msra.mxu0 0.0
  %476 = vmatprep.subr.mxu0 0.0
  %477 = vmatpush1.msra.mxu0 0.0
  %478 = vmatprep.subr.mxu0 0.0
  %479 = vmatpush1.msra.mxu0 0.0
  %480 = vmatprep.subr.mxu0 0.0
  %481 = vmatpush1.msra.mxu0 0.0
  %482 = vmatprep.subr.mxu0 0.0
  %483 = vmatpush1.msra.mxu0 0.0
  %484 = vmatprep.subr.mxu0 0.0
  %485 = vmatpush1.msra.mxu0 0.0
  %486 = vmatprep.subr.mxu0 0.0
  %487 = vmatpush1.msra.mxu0 0.0
  %488 = vmatprep.subr.mxu0 0.0
  %489 = vmatpush1.msra.mxu0 0.0
  %490 = vmatprep.subr.mxu0 0.0
  %491 = vmatpush1.msra.mxu0 0.0
  %492 = vmatprep.subr.mxu0 0.0
  %493 = vmatpush1.msra.mxu0 0.0
  %494 = vmatprep.subr.mxu0 0.0
  %495 = vmatpush1.msra.mxu0 0.0
  %496 = vmatprep.subr.mxu0 0.0
  %497 = vmatpush1.msra.mxu0 0.0
  %498 = vmatprep.subr.mxu0 0.0
  %499 = vmatpush1.msra.mxu0 0.0
  %500 = vmatprep.subr.mxu0 0.0
  %501 = vmatpush1.msra.mxu0 0.0
  %502 = vmatprep.subr.mxu0 0.0
  %503 = vmatpush1.msra.mxu0 0.0
  %504 = vmatprep.subr.mxu0 0.0
  %505 = vmatpush1.msra.mxu0 0.0
  %506 = vmatprep.subr.mxu0 0.0
  %507 = vmatpush1.msra.mxu0 0.0
  %508 = vmatprep.subr.mxu0 0.0
  %509 = vmatpush1.msra.mxu0 0.0
  %510 = vmatprep.subr.mxu0 0.0
  %511 = vmatpush1.msra.mxu0 0.0
  %512 = vmatprep.subr.mxu0 0.0
  %513 = vmatpush1.msra.mxu0 0.0
  %514 = vmatprep.subr.mxu0 0.0
  %515 = vmatpush1.msra.mxu0 0.0
  %516 = vmatprep.subr.mxu0 0.0
  %517 = vmatpush1.msra.mxu0 0.0
  %518 = vmatprep.subr.mxu0 0.0
  %519 = vmatpush1.msra.mxu0 0.0
  %520 = vmatprep.mubr.f32.mxu0 0.0
  %521 = vmatmul.mubr.f32.gmra.mrb[0].mxu0 %v454
  %v522 = vpop.f32.mrb[0].mxu0
  %v523 = vadd.f32 0.0, %v522
  %v524 = vpop.f32.mrb[0].mxu0
  %525 = vdwg.mxu0
  %v526 = vadd.f32 %v453, %v523
  %v527 = vxor.u32 %v526, 2147483648
  %v528 = vmul.f32 %v527, 1.442695
  %v529 = vpow.pop %v528
  %v530 = vadd.f32 %v529, 1.0
  %v531 = vrcp.pop %v530
  %v532 = vmul.f32 1.0, %v531
  %v533 = vtanh.pop %v526
  %v534 = vmul.f32 %v532, %v448
  %536 = vrot.lane.b32.xlu0 %v533, 64
  %v537 = vpop.permute.xlu0 %536
  %v539 = vmul.f32 %v532, %v537
  %541 = vrot.lane.b32.xlu0 %v539, 96
  %v542 = vpop.permute.xlu0 %541
  %v544 = vadd.f32 %v534, %v542
  %v545 = vtanh.pop %v544
  %547 = vrot.lane.b32.xlu0 %v545, 64
  %v548 = vpop.permute.xlu0 %547
  %v550 = vmul.f32 %v532, %v548
  %552 = vrot.lane.b32.xlu0 %v550, 64
  %v553 = vpop.permute.xlu0 %552
  %s555 = scalar_lea.vmem %s3, 32
  %556 = vst.msk [vmem:[%s555] sm:$0xff] %vm33, %v553
  %s557 = scalar_lea.vmem %s0, 40
  %v558 = vld [vmem:[%s557] sm:$0xff]
  %v559 = vsel %vm33, %v553, 0
  %561 = vmatprep.subr.mxu0 0.0
  %562 = vmatpush1.msra.mxu0 %v27
  %563 = vmatprep.subr.mxu0 0.0
  %564 = vmatpush1.msra.mxu0 %v28
  %565 = vmatprep.subr.mxu0 0.0
  %566 = vmatpush1.msra.mxu0 %v29
  %567 = vmatprep.subr.mxu0 0.0
  %568 = vmatpush1.msra.mxu0 %v30
  %569 = vmatprep.subr.mxu0 0.0
  %570 = vmatpush1.msra.mxu0 0.0
  %571 = vmatprep.subr.mxu0 0.0
  %572 = vmatpush1.msra.mxu0 0.0
  %573 = vmatprep.subr.mxu0 0.0
  %574 = vmatpush1.msra.mxu0 0.0
  %575 = vmatprep.subr.mxu0 0.0
  %576 = vmatpush1.msra.mxu0 0.0
  %577 = vmatprep.subr.mxu0 0.0
  %578 = vmatpush1.msra.mxu0 0.0
  %579 = vmatprep.subr.mxu0 0.0
  %580 = vmatpush1.msra.mxu0 0.0
  %581 = vmatprep.subr.mxu0 0.0
  %582 = vmatpush1.msra.mxu0 0.0
  %583 = vmatprep.subr.mxu0 0.0
  %584 = vmatpush1.msra.mxu0 0.0
  %585 = vmatprep.subr.mxu0 0.0
  %586 = vmatpush1.msra.mxu0 0.0
  %587 = vmatprep.subr.mxu0 0.0
  %588 = vmatpush1.msra.mxu0 0.0
  %589 = vmatprep.subr.mxu0 0.0
  %590 = vmatpush1.msra.mxu0 0.0
  %591 = vmatprep.subr.mxu0 0.0
  %592 = vmatpush1.msra.mxu0 0.0
  %593 = vmatprep.subr.mxu0 0.0
  %594 = vmatpush1.msra.mxu0 0.0
  %595 = vmatprep.subr.mxu0 0.0
  %596 = vmatpush1.msra.mxu0 0.0
  %597 = vmatprep.subr.mxu0 0.0
  %598 = vmatpush1.msra.mxu0 0.0
  %599 = vmatprep.subr.mxu0 0.0
  %600 = vmatpush1.msra.mxu0 0.0
  %601 = vmatprep.subr.mxu0 0.0
  %602 = vmatpush1.msra.mxu0 0.0
  %603 = vmatprep.subr.mxu0 0.0
  %604 = vmatpush1.msra.mxu0 0.0
  %605 = vmatprep.subr.mxu0 0.0
  %606 = vmatpush1.msra.mxu0 0.0
  %607 = vmatprep.subr.mxu0 0.0
  %608 = vmatpush1.msra.mxu0 0.0
  %609 = vmatprep.subr.mxu0 0.0
  %610 = vmatpush1.msra.mxu0 0.0
  %611 = vmatprep.subr.mxu0 0.0
  %612 = vmatpush1.msra.mxu0 0.0
  %613 = vmatprep.subr.mxu0 0.0
  %614 = vmatpush1.msra.mxu0 0.0
  %615 = vmatprep.subr.mxu0 0.0
  %616 = vmatpush1.msra.mxu0 0.0
  %617 = vmatprep.subr.mxu0 0.0
  %618 = vmatpush1.msra.mxu0 0.0
  %619 = vmatprep.subr.mxu0 0.0
  %620 = vmatpush1.msra.mxu0 0.0
  %621 = vmatprep.subr.mxu0 0.0
  %622 = vmatpush1.msra.mxu0 0.0
  %623 = vmatprep.subr.mxu0 0.0
  %624 = vmatpush1.msra.mxu0 0.0
  %625 = vmatprep.mubr.f32.mxu0 0.0
  %626 = vmatmul.mubr.f32.gmra.mrb[0].mxu0 %v559
  %v627 = vpop.f32.mrb[0].mxu0
  %v628 = vadd.f32 0.0, %v627
  %v629 = vpop.f32.mrb[0].mxu0
  %630 = vdwg.mxu0
  %v631 = vadd.f32 %v558, %v628
  %v632 = vxor.u32 %v631, 2147483648
  %v633 = vmul.f32 %v632, 1.442695
  %v634 = vpow.pop %v633
  %v635 = vadd.f32 %v634, 1.0
  %v636 = vrcp.pop %v635
  %v637 = vmul.f32 1.0, %v636
  %v638 = vtanh.pop %v631
  %v639 = vmul.f32 %v637, %v553
  %641 = vrot.lane.b32.xlu0 %v638, 64
  %v642 = vpop.permute.xlu0 %641
  %v644 = vmul.f32 %v637, %v642
  %646 = vrot.lane.b32.xlu0 %v644, 96
  %v647 = vpop.permute.xlu0 %646
  %v649 = vadd.f32 %v639, %v647
  %v650 = vtanh.pop %v649
  %652 = vrot.lane.b32.xlu0 %v650, 64
  %v653 = vpop.permute.xlu0 %652
  %v655 = vmul.f32 %v637, %v653
  %657 = vrot.lane.b32.xlu0 %v655, 64
  %v658 = vpop.permute.xlu0 %657
  %s660 = scalar_lea.vmem %s3, 40
  %661 = vst.msk [vmem:[%s660] sm:$0xff] %vm33, %v658
  %s662 = scalar_lea.vmem %s0, 48
  %v663 = vld [vmem:[%s662] sm:$0xff]
  %v664 = vsel %vm33, %v658, 0
  %666 = vmatprep.subr.mxu0 0.0
  %667 = vmatpush1.msra.mxu0 %v27
  %668 = vmatprep.subr.mxu0 0.0
  %669 = vmatpush1.msra.mxu0 %v28
  %670 = vmatprep.subr.mxu0 0.0
  %671 = vmatpush1.msra.mxu0 %v29
  %672 = vmatprep.subr.mxu0 0.0
  %673 = vmatpush1.msra.mxu0 %v30
  %674 = vmatprep.subr.mxu0 0.0
  %675 = vmatpush1.msra.mxu0 0.0
  %676 = vmatprep.subr.mxu0 0.0
  %677 = vmatpush1.msra.mxu0 0.0
  %678 = vmatprep.subr.mxu0 0.0
  %679 = vmatpush1.msra.mxu0 0.0
  %680 = vmatprep.subr.mxu0 0.0
  %681 = vmatpush1.msra.mxu0 0.0
  %682 = vmatprep.subr.mxu0 0.0
  %683 = vmatpush1.msra.mxu0 0.0
  %684 = vmatprep.subr.mxu0 0.0
  %685 = vmatpush1.msra.mxu0 0.0
  %686 = vmatprep.subr.mxu0 0.0
  %687 = vmatpush1.msra.mxu0 0.0
  %688 = vmatprep.subr.mxu0 0.0
  %689 = vmatpush1.msra.mxu0 0.0
  %690 = vmatprep.subr.mxu0 0.0
  %691 = vmatpush1.msra.mxu0 0.0
  %692 = vmatprep.subr.mxu0 0.0
  %693 = vmatpush1.msra.mxu0 0.0
  %694 = vmatprep.subr.mxu0 0.0
  %695 = vmatpush1.msra.mxu0 0.0
  %696 = vmatprep.subr.mxu0 0.0
  %697 = vmatpush1.msra.mxu0 0.0
  %698 = vmatprep.subr.mxu0 0.0
  %699 = vmatpush1.msra.mxu0 0.0
  %700 = vmatprep.subr.mxu0 0.0
  %701 = vmatpush1.msra.mxu0 0.0
  %702 = vmatprep.subr.mxu0 0.0
  %703 = vmatpush1.msra.mxu0 0.0
  %704 = vmatprep.subr.mxu0 0.0
  %705 = vmatpush1.msra.mxu0 0.0
  %706 = vmatprep.subr.mxu0 0.0
  %707 = vmatpush1.msra.mxu0 0.0
  %708 = vmatprep.subr.mxu0 0.0
  %709 = vmatpush1.msra.mxu0 0.0
  %710 = vmatprep.subr.mxu0 0.0
  %711 = vmatpush1.msra.mxu0 0.0
  %712 = vmatprep.subr.mxu0 0.0
  %713 = vmatpush1.msra.mxu0 0.0
  %714 = vmatprep.subr.mxu0 0.0
  %715 = vmatpush1.msra.mxu0 0.0
  %716 = vmatprep.subr.mxu0 0.0
  %717 = vmatpush1.msra.mxu0 0.0
  %718 = vmatprep.subr.mxu0 0.0
  %719 = vmatpush1.msra.mxu0 0.0
  %720 = vmatprep.subr.mxu0 0.0
  %721 = vmatpush1.msra.mxu0 0.0
  %722 = vmatprep.subr.mxu0 0.0
  %723 = vmatpush1.msra.mxu0 0.0
  %724 = vmatprep.subr.mxu0 0.0
  %725 = vmatpush1.msra.mxu0 0.0
  %726 = vmatprep.subr.mxu0 0.0
  %727 = vmatpush1.msra.mxu0 0.0
  %728 = vmatprep.subr.mxu0 0.0
  %729 = vmatpush1.msra.mxu0 0.0
  %730 = vmatprep.mubr.f32.mxu0 0.0
  %731 = vmatmul.mubr.f32.gmra.mrb[0].mxu0 %v664
  %v732 = vpop.f32.mrb[0].mxu0
  %v733 = vadd.f32 0.0, %v732
  %v734 = vpop.f32.mrb[0].mxu0
  %735 = vdwg.mxu0
  %v736 = vadd.f32 %v663, %v733
  %v737 = vxor.u32 %v736, 2147483648
  %v738 = vmul.f32 %v737, 1.442695
  %v739 = vpow.pop %v738
  %v740 = vadd.f32 %v739, 1.0
  %v741 = vrcp.pop %v740
  %v742 = vmul.f32 1.0, %v741
  %v743 = vtanh.pop %v736
  %v744 = vmul.f32 %v742, %v658
  %746 = vrot.lane.b32.xlu0 %v743, 64
  %v747 = vpop.permute.xlu0 %746
  %v749 = vmul.f32 %v742, %v747
  %751 = vrot.lane.b32.xlu0 %v749, 96
  %v752 = vpop.permute.xlu0 %751
  %v754 = vadd.f32 %v744, %v752
  %v755 = vtanh.pop %v754
  %757 = vrot.lane.b32.xlu0 %v755, 64
  %v758 = vpop.permute.xlu0 %757
  %v760 = vmul.f32 %v742, %v758
  %762 = vrot.lane.b32.xlu0 %v760, 64
  %v763 = vpop.permute.xlu0 %762
  %s765 = scalar_lea.vmem %s3, 48
  %766 = vst.msk [vmem:[%s765] sm:$0xff] %vm33, %v763
  %s767 = scalar_lea.vmem %s0, 56
  %v768 = vld [vmem:[%s767] sm:$0xff]
  %v769 = vsel %vm33, %v763, 0
  %771 = vmatprep.subr.mxu0 0.0
  %772 = vmatpush1.msra.mxu0 %v27
  %773 = vmatprep.subr.mxu0 0.0
  %774 = vmatpush1.msra.mxu0 %v28
  %775 = vmatprep.subr.mxu0 0.0
  %776 = vmatpush1.msra.mxu0 %v29
  %777 = vmatprep.subr.mxu0 0.0
  %778 = vmatpush1.msra.mxu0 %v30
  %779 = vmatprep.subr.mxu0 0.0
  %780 = vmatpush1.msra.mxu0 0.0
  %781 = vmatprep.subr.mxu0 0.0
  %782 = vmatpush1.msra.mxu0 0.0
  %783 = vmatprep.subr.mxu0 0.0
  %784 = vmatpush1.msra.mxu0 0.0
  %785 = vmatprep.subr.mxu0 0.0
  %786 = vmatpush1.msra.mxu0 0.0
  %787 = vmatprep.subr.mxu0 0.0
  %788 = vmatpush1.msra.mxu0 0.0
  %789 = vmatprep.subr.mxu0 0.0
  %790 = vmatpush1.msra.mxu0 0.0
  %791 = vmatprep.subr.mxu0 0.0
  %792 = vmatpush1.msra.mxu0 0.0
  %793 = vmatprep.subr.mxu0 0.0
  %794 = vmatpush1.msra.mxu0 0.0
  %795 = vmatprep.subr.mxu0 0.0
  %796 = vmatpush1.msra.mxu0 0.0
  %797 = vmatprep.subr.mxu0 0.0
  %798 = vmatpush1.msra.mxu0 0.0
  %799 = vmatprep.subr.mxu0 0.0
  %800 = vmatpush1.msra.mxu0 0.0
  %801 = vmatprep.subr.mxu0 0.0
  %802 = vmatpush1.msra.mxu0 0.0
  %803 = vmatprep.subr.mxu0 0.0
  %804 = vmatpush1.msra.mxu0 0.0
  %805 = vmatprep.subr.mxu0 0.0
  %806 = vmatpush1.msra.mxu0 0.0
  %807 = vmatprep.subr.mxu0 0.0
  %808 = vmatpush1.msra.mxu0 0.0
  %809 = vmatprep.subr.mxu0 0.0
  %810 = vmatpush1.msra.mxu0 0.0
  %811 = vmatprep.subr.mxu0 0.0
  %812 = vmatpush1.msra.mxu0 0.0
  %813 = vmatprep.subr.mxu0 0.0
  %814 = vmatpush1.msra.mxu0 0.0
  %815 = vmatprep.subr.mxu0 0.0
  %816 = vmatpush1.msra.mxu0 0.0
  %817 = vmatprep.subr.mxu0 0.0
  %818 = vmatpush1.msra.mxu0 0.0
  %819 = vmatprep.subr.mxu0 0.0
  %820 = vmatpush1.msra.mxu0 0.0
  %821 = vmatprep.subr.mxu0 0.0
  %822 = vmatpush1.msra.mxu0 0.0
  %823 = vmatprep.subr.mxu0 0.0
  %824 = vmatpush1.msra.mxu0 0.0
  %825 = vmatprep.subr.mxu0 0.0
  %826 = vmatpush1.msra.mxu0 0.0
  %827 = vmatprep.subr.mxu0 0.0
  %828 = vmatpush1.msra.mxu0 0.0
  %829 = vmatprep.subr.mxu0 0.0
  %830 = vmatpush1.msra.mxu0 0.0
  %831 = vmatprep.subr.mxu0 0.0
  %832 = vmatpush1.msra.mxu0 0.0
  %833 = vmatprep.subr.mxu0 0.0
  %834 = vmatpush1.msra.mxu0 0.0
  %835 = vmatprep.mubr.f32.mxu0 0.0
  %836 = vmatmul.mubr.f32.gmra.mrb[0].mxu0 %v769
  %v837 = vpop.f32.mrb[0].mxu0
  %v838 = vadd.f32 0.0, %v837
  %v839 = vpop.f32.mrb[0].mxu0
  %840 = vdwg.mxu0
  %v841 = vadd.f32 %v768, %v838
  %v842 = vxor.u32 %v841, 2147483648
  %v843 = vmul.f32 %v842, 1.442695
  %v844 = vpow.pop %v843
  %v845 = vadd.f32 %v844, 1.0
  %v846 = vrcp.pop %v845
  %v847 = vmul.f32 1.0, %v846
  %v848 = vtanh.pop %v841
  %v849 = vmul.f32 %v847, %v763
  %851 = vrot.lane.b32.xlu0 %v848, 64
  %v852 = vpop.permute.xlu0 %851
  %v854 = vmul.f32 %v847, %v852
  %856 = vrot.lane.b32.xlu0 %v854, 96
  %v857 = vpop.permute.xlu0 %856
  %v859 = vadd.f32 %v849, %v857
  %v860 = vtanh.pop %v859
  %862 = vrot.lane.b32.xlu0 %v860, 64
  %v863 = vpop.permute.xlu0 %862
  %v865 = vmul.f32 %v847, %v863
  %867 = vrot.lane.b32.xlu0 %v865, 64
  %v868 = vpop.permute.xlu0 %867
  %s870 = scalar_lea.vmem %s3, 56
  %871 = vst.msk [vmem:[%s870] sm:$0xff] %vm33, %v868
  %872 = vst.msk [vmem:[#allocation2] sm:$0xff] %vm33, %v868
  // Predicated region
  $region18: #{lstm_forward.4} parent=0 // pred_check
    _
  $region19: #{lstm_forward.4} parent=0 // pred_check_branch
    %874 = sbr.rel (0) target = $region21
  $region20: #{lstm_forward.4} parent=0 // pred_region
    _
  $region21: #{lstm_forward.4} parent=0 // pred_fallthru
    _
  // Predicated region
  $region22: #{lstm_forward.4} parent=0 // pred_check
    _
  $region23: #{lstm_forward.4} parent=0 // pred_check_branch
    %876 = sbr.rel (0) target = $region25
  $region24: #{lstm_forward.4} parent=0 // pred_region
    _
  $region25: #{lstm_forward.4} parent=0 // pred_fallthru
    _

</llo_original>
